<compile_context>
chip_gen: v7x
topology: tpu7x:2x2x1
jax: 0.10.0
libtpu: 0.0.40
codegen_flags: <defaults>
</compile_context>

<pallas_src>
import functools

import jax
import jax.numpy as jnp
import numpy as np
from jax.experimental import pallas as pl
from jax.experimental.pallas import tpu as pltpu

KH = KW = 4          # conv kernel size
LN_EPS = 1e-5        # nn.LayerNorm default eps
# PyTorch Conv2d(kernel_size=4, padding='same') pads (top,left)=1, (bottom,right)=2.


# --------------------------------------------------------------------------
# In-kernel helpers
# --------------------------------------------------------------------------
def _col_masks(H, W):
    """Boolean (1, H*W) masks for the 3 column shifts that can wrap a row."""
    w_idx = jax.lax.broadcasted_iota(jnp.int32, (1, H * W), 1) % W
    return {-1: w_idx >= 1, 0: None, 1: w_idx <= W - 2, 2: w_idx <= W - 3}


def _zero_pad_borders(pad_ref, H, W):
    """Zero only the flat-padding borders; the interior is rewritten by every conv."""
    HW, OFF, PADN = H * W, W + 1, H * W + 3 * W + 3
    C = pad_ref.shape[0]
    pad_ref[:, 0:OFF] = jnp.zeros((C, OFF), jnp.float32)
    pad_ref[:, OFF + HW:PADN] = jnp.zeros((C, PADN - OFF - HW), jnp.float32)


def _layer_norm(v, w, b):
    """LayerNorm over the whole (C, H*W) block (== nn.LayerNorm([C,H,W]))."""
    m = jnp.mean(v)
    var = jnp.mean(jnp.square(v - m))
    return (v - m) * jax.lax.rsqrt(var + LN_EPS) * w + b


def _conv4x4_core(v, tap_weight, bias, pad_ref, masks, H, W):
    """4x4 'same' cross-correlation of v:(Cin, H*W) -> (Cout, H*W) on the MXU.

    tap_weight(t) returns the (Cout, Cin) weight slice for tap t = ky*4 + kx.
    Tap (ky, kx) is the flat slice starting at OFF + (ky-1)*W + (kx-1) of the
    zero-bordered scratch; column-wrap positions are masked to zero.
    """
    HW, OFF = H * W, W + 1
    pad_ref[:, OFF:OFF + HW] = v
    acc = None
    for ky in range(KH):
        for kx in range(KW):
            dx = kx - 1
            start = OFF + (ky - 1) * W + dx
            tap = pad_ref[:, start:start + HW]
            if masks[dx] is not None:
                tap = jnp.where(masks[dx], tap, 0.0)
            part = jnp.dot(tap_weight(ky * KW + kx), tap,
                           preferred_element_type=jnp.float32)
            acc = part if acc is None else acc + part
    return acc + bias  # bias: (Cout, 1), broadcast over lanes


# --------------------------------------------------------------------------
# Kernels
# --------------------------------------------------------------------------
def _conv4x4_kernel(H, W, x_ref, w_ref, b_ref, o_ref, pad_ref):
    """Standalone Conv2d(k=4, padding='same'): (Cin,H*W) -> (Cout,H*W)."""
    _zero_pad_borders(pad_ref, H, W)
    masks = _col_masks(H, W)
    out = _conv4x4_core(x_ref[...].astype(jnp.float32),
                        lambda t: w_ref[t], b_ref[...],
                        pad_ref, masks, H, W)
    o_ref[...] = out.astype(o_ref.dtype)


def _res_blocks_kernel(H, W, num_blocks,
                       x_ref, ln1w_ref, ln1b_ref, w1_ref, b1_ref,
                       ln2w_ref, ln2b_ref, w2_ref, b2_ref,
                       o_ref, pad_ref):
    """Fused stack of ResBlocks: (LN -> ReLU -> conv4x4) x2 + residual, x num_blocks."""
    _zero_pad_borders(pad_ref, H, W)
    masks = _col_masks(H, W)
    z = x_ref[...].astype(jnp.float32)
    for blk in range(num_blocks):
        res = z
        h = jnp.maximum(_layer_norm(z, ln1w_ref[blk], ln1b_ref[blk]), 0.0)
        h = _conv4x4_core(h, lambda t, blk=blk: w1_ref[blk, t], b1_ref[blk],
                          pad_ref, masks, H, W)
        h = jnp.maximum(_layer_norm(h, ln2w_ref[blk], ln2b_ref[blk]), 0.0)
        h = _conv4x4_core(h, lambda t, blk=blk: w2_ref[blk, t], b2_ref[blk],
                          pad_ref, masks, H, W)
        z = h + res
    o_ref[...] = z.astype(o_ref.dtype)


# --------------------------------------------------------------------------
# Wrappers (pallas_call)
# --------------------------------------------------------------------------
def conv4x4_same(x, w, b):
    """NCHW Conv2d(kernel_size=4, padding='same'). x:(B,Cin,H,W), w:(Cout,Cin,4,4)."""
    B, Cin, H, W = x.shape
    Cout = w.shape[0]
    HW = H * W
    xf = x.reshape(B, Cin, HW).astype(jnp.float32)
    wt = jnp.transpose(w, (2, 3, 0, 1)).reshape(KH * KW, Cout, Cin).astype(jnp.float32)
    bf = b.reshape(Cout, 1).astype(jnp.float32)
    out = pl.pallas_call(
        functools.partial(_conv4x4_kernel, H, W),
        out_shape=jax.ShapeDtypeStruct((B, Cout, HW), jnp.float32),
        grid=(B,),
        in_specs=[
            pl.BlockSpec((None, Cin, HW), lambda i: (i, 0, 0)),
            pl.BlockSpec((KH * KW, Cout, Cin), lambda i: (0, 0, 0)),
            pl.BlockSpec((Cout, 1), lambda i: (0, 0)),
        ],
        out_specs=pl.BlockSpec((None, Cout, HW), lambda i: (i, 0, 0)),
        scratch_shapes=[pltpu.VMEM((Cin, HW + 3 * W + 3), jnp.float32)],
        compiler_params=pltpu.CompilerParams(dimension_semantics=("parallel",)),
    )(xf, wt, bf)
    return out.reshape(B, Cout, H, W)


def res_blocks(x, blocks_params):
    """Fused stack of ResBlocks. x:(B,C,H,W); blocks_params: list of 8-tuples."""
    B, C, H, W = x.shape
    HW = H * W
    NB = len(blocks_params)
    ln1w = jnp.stack([p[0].reshape(C, HW) for p in blocks_params]).astype(jnp.float32)
    ln1b = jnp.stack([p[1].reshape(C, HW) for p in blocks_params]).astype(jnp.float32)
    w1 = jnp.stack([jnp.transpose(p[2], (2, 3, 0, 1)).reshape(KH * KW, C, C)
                    for p in blocks_params]).astype(jnp.float32)
    b1 = jnp.stack([p[3].reshape(C, 1) for p in blocks_params]).astype(jnp.float32)
    ln2w = jnp.stack([p[4].reshape(C, HW) for p in blocks_params]).astype(jnp.float32)
    ln2b = jnp.stack([p[5].reshape(C, HW) for p in blocks_params]).astype(jnp.float32)
    w2 = jnp.stack([jnp.transpose(p[6], (2, 3, 0, 1)).reshape(KH * KW, C, C)
                    for p in blocks_params]).astype(jnp.float32)
    b2 = jnp.stack([p[7].reshape(C, 1) for p in blocks_params]).astype(jnp.float32)
    xf = x.reshape(B, C, HW).astype(jnp.float32)

    ln_spec = pl.BlockSpec((NB, C, HW), lambda i: (0, 0, 0))
    w_spec = pl.BlockSpec((NB, KH * KW, C, C), lambda i: (0, 0, 0, 0))
    b_spec = pl.BlockSpec((NB, C, 1), lambda i: (0, 0, 0))

    out = pl.pallas_call(
        functools.partial(_res_blocks_kernel, H, W, NB),
        out_shape=jax.ShapeDtypeStruct((B, C, HW), jnp.float32),
        grid=(B,),
        in_specs=[
            pl.BlockSpec((None, C, HW), lambda i: (i, 0, 0)),
            ln_spec, ln_spec, w_spec, b_spec,
            ln_spec, ln_spec, w_spec, b_spec,
        ],
        out_specs=pl.BlockSpec((None, C, HW), lambda i: (i, 0, 0)),
        scratch_shapes=[pltpu.VMEM((C, HW + 3 * W + 3), jnp.float32)],
        compiler_params=pltpu.CompilerParams(dimension_semantics=("parallel",)),
    )(xf, ln1w, ln1b, w1, b1, ln2w, ln2b, w2, b2)
    return out.reshape(B, C, H, W)


# --------------------------------------------------------------------------
# Full Neural_receiver forward
# --------------------------------------------------------------------------
def neural_receiver(y, template_pilot, params, *, streams, num_bits_per_symbol):
    B, _, T, S, _ = y.shape
    y_nhwc = jnp.transpose(y, (0, 2, 3, 1, 4)).reshape(B, T, S, -1)
    p_nhwc = jnp.transpose(template_pilot, (0, 2, 3, 1, 4)).reshape(B, T, S, -1)
    p_feat = conv4x4_same(jnp.transpose(p_nhwc, (0, 3, 1, 2)),
                          params["pilot_w"], params["pilot_b"])          # (B,24,T,S)
    z = jnp.concatenate([jnp.transpose(y_nhwc, (0, 3, 1, 2)), p_feat], axis=1)  # (B,28,T,S)
    z = res_blocks(z, params["blocks"])
    z = conv4x4_same(z, params["final_w"], params["final_b"])            # (B,streams*nbps,T,S)
    z = jnp.transpose(z, (0, 2, 3, 1)).reshape(B, T, S, streams, num_bits_per_symbol)
    return jnp.transpose(z, (0, 3, 1, 2, 4))


# --------------------------------------------------------------------------
# Pure-JAX reference (matches the PyTorch module exactly)
# --------------------------------------------------------------------------
def _ref_layer_norm(v, w, b):
    m = v.mean(axis=(1, 2, 3), keepdims=True)
    var = jnp.square(v - m).mean(axis=(1, 2, 3), keepdims=True)
    return (v - m) / jnp.sqrt(var + LN_EPS) * w[None] + b[None]


def _ref_conv(v, w, b):
    out = jax.lax.conv_general_dilated(
        v, w, window_strides=(1, 1), padding=((1, 2), (1, 2)),
        dimension_numbers=("NCHW", "OIHW", "NCHW"),
        precision=jax.lax.Precision.HIGHEST)
    return out + b[None, :, None, None]


def ref_neural_receiver(y, template_pilot, params, *, streams, num_bits_per_symbol):
    B, _, T, S, _ = y.shape
    y_nhwc = jnp.transpose(y, (0, 2, 3, 1, 4)).reshape(B, T, S, -1)
    p_nhwc = jnp.transpose(template_pilot, (0, 2, 3, 1, 4)).reshape(B, T, S, -1)
    p_feat = _ref_conv(jnp.transpose(p_nhwc, (0, 3, 1, 2)),
                       params["pilot_w"], params["pilot_b"])
    z = jnp.concatenate([jnp.transpose(y_nhwc, (0, 3, 1, 2)), p_feat], axis=1)
    for (ln1w, ln1b, w1, b1, ln2w, ln2b, w2, b2) in params["blocks"]:
        res = z
        h = _ref_conv(jax.nn.relu(_ref_layer_norm(z, ln1w, ln1b)), w1, b1)
        h = _ref_conv(jax.nn.relu(_ref_layer_norm(h, ln2w, ln2b)), w2, b2)
        z = h + res
    z = _ref_conv(z, params["final_w"], params["final_b"])
    z = jnp.transpose(z, (0, 2, 3, 1)).reshape(B, T, S, streams, num_bits_per_symbol)
    return jnp.transpose(z, (0, 3, 1, 2, 4))


# --------------------------------------------------------------------------
# Parameters / test harness
# --------------------------------------------------------------------------
def init_params(key, *, streams, num_bits_per_symbol, T, S, num_blocks):
    c_in = 2 * streams          # 4
    c_pilot = 24
    C = c_in + c_pilot          # 28 (fixed by the module)
    c_out = streams * num_bits_per_symbol
    keys = iter(jax.random.split(key, 4 + 8 * num_blocks))

    def conv_init(k, cout, cin):
        scale = 1.0 / np.sqrt(cin * KH * KW)
        return scale * jax.random.normal(k, (cout, cin, KH, KW), jnp.float32)

    params = {
        "pilot_w": conv_init(next(keys), c_pilot, c_in),
        "pilot_b": 0.1 * jax.random.normal(next(keys), (c_pilot,), jnp.float32),
        "final_w": conv_init(next(keys), c_out, C),
        "final_b": 0.1 * jax.random.normal(next(keys), (c_out,), jnp.float32),
        "blocks": [],
    }
    for _ in range(num_blocks):
        params["blocks"].append((
            1.0 + 0.1 * jax.random.normal(next(keys), (C, T, S), jnp.float32),  # ln1 w
            0.1 * jax.random.normal(next(keys), (C, T, S), jnp.float32),        # ln1 b
            conv_init(next(keys), C, C),                                        # conv1 w
            0.1 * jax.random.normal(next(keys), (C,), jnp.float32),             # conv1 b
            1.0 + 0.1 * jax.random.normal(next(keys), (C, T, S), jnp.float32),  # ln2 w
            0.1 * jax.random.normal(next(keys), (C, T, S), jnp.float32),        # ln2 b
            conv_init(next(keys), C, C),                                        # conv2 w
            0.1 * jax.random.normal(next(keys), (C,), jnp.float32),             # conv2 b
        ))
    return params


if __name__ == "__main__":
    B, streams, T, S = 2, 2, 8, 16      # batch, streams, timesymbols, subcarriers
    num_bits_per_symbol = 2
    num_blocks = 3                      # small test config (full model uses 10)

    key = jax.random.PRNGKey(0)
    kp, kyy, ktp = jax.random.split(key, 3)
    params = init_params(kp, streams=streams, num_bits_per_symbol=num_bits_per_symbol,
                         T=T, S=S, num_blocks=num_blocks)
    y = jax.random.normal(kyy, (B, streams, T, S, 2), jnp.float32)
    template_pilot = jax.random.normal(ktp, (B, streams, T, S, 2), jnp.float32)

    out = jax.block_until_ready(
        neural_receiver(y, template_pilot, params,
                        streams=streams, num_bits_per_symbol=num_bits_per_symbol))
    ref = jax.block_until_ready(
        ref_neural_receiver(y, template_pilot, params,
                            streams=streams, num_bits_per_symbol=num_bits_per_symbol))
    np.testing.assert_allclose(np.asarray(out), np.asarray(ref), rtol=2e-3, atol=2e-3)
    print("KERNEL_OK")
</pallas_src>

<mosaic_0001>
module attributes {stable_mosaic.version = 11 : i64} {
  func.func @_conv4x4_kernel(%arg0: i32, %arg1: memref<1x4x128xf32, #tpu.memory_space<vmem>>, %arg2: memref<16x24x4xf32, #tpu.memory_space<vmem>>, %arg3: memref<24x1xf32, #tpu.memory_space<vmem>>, %arg4: memref<1x24x128xf32, #tpu.memory_space<vmem>>, %arg5: memref<4x179xf32, #tpu.memory_space<vmem>>) attributes {dimension_semantics = [#tpu.dimension_semantics<parallel>], iteration_bounds = array<i64: 2>, scalar_prefetch = 0 : i64, scratch_operands = 1 : i64, tpu.core_type = #tpu.core_type<tc>, window_params = [{transform_indices = @transform_0, window_bounds = array<i64: 1, 4, 128>}, {pipeline_mode = #tpu.pipeline_mode<synchronous>, transform_indices = @transform_1, window_bounds = array<i64: 16, 24, 4>}, {pipeline_mode = #tpu.pipeline_mode<synchronous>, transform_indices = @transform_2, window_bounds = array<i64: 24, 1>}, {transform_indices = @transform_3, window_bounds = array<i64: 1, 24, 128>}]} {
    %cst = arith.constant 0.000000e+00 : f32
    %0 = vector.broadcast %cst : f32 to vector<4x17xf32>
    %c0 = arith.constant 0 : index
    %c0_0 = arith.constant 0 : index
    %1 = vector.load %arg5[%c0, %c0_0] : memref<4x179xf32, #tpu.memory_space<vmem>>, vector<4x17xf32>
    tpu.vector_store %arg5[%c0, %c0_0], %0 {strides = array<i32>} : memref<4x179xf32, #tpu.memory_space<vmem>>, vector<4x17xf32>,
    %cst_1 = arith.constant 0.000000e+00 : f32
    %2 = vector.broadcast %cst_1 : f32 to vector<4x34xf32>
    %c0_2 = arith.constant 0 : index
    %c145 = arith.constant 145 : index
    %3 = vector.load %arg5[%c0_2, %c145] : memref<4x179xf32, #tpu.memory_space<vmem>>, vector<4x34xf32>
    tpu.vector_store %arg5[%c0_2, %c145], %2 {strides = array<i32>} : memref<4x179xf32, #tpu.memory_space<vmem>>, vector<4x34xf32>,
    %4 = tpu.iota {dimensions = array<i32: 1>} : vector<1x128xi32>
    %c16_i32 = arith.constant 16 : i32
    %c0_i32 = arith.constant 0 : i32
    %5 = arith.cmpi eq, %c16_i32, %c0_i32 : i32
    %c1_i32 = arith.constant 1 : i32
    %6 = arith.select %5, %c1_i32, %c16_i32 : i32
    %7 = vector.broadcast %6 : i32 to vector<1x128xi32>
    %8 = arith.remsi %4, %7 : vector<1x128xi32>
    %c0_i32_3 = arith.constant 0 : i32
    %9 = vector.broadcast %c0_i32_3 : i32 to vector<1x128xi32>
    %10 = arith.cmpi ne, %8, %9 : vector<1x128xi32>
    %c0_i32_4 = arith.constant 0 : i32
    %11 = vector.broadcast %c0_i32_4 : i32 to vector<1x128xi32>
    %12 = arith.cmpi slt, %8, %11 : vector<1x128xi32>
    %c0_i32_5 = arith.constant 0 : i32
    %13 = arith.cmpi slt, %6, %c0_i32_5 : i32
    %14 = vector.broadcast %13 : i1 to vector<1x128xi1>
    %15 = vector.broadcast %14 : vector<1x128xi1> to vector<1x128xi1>
    %16 = arith.xori %12, %15 : vector<1x128xi1>
    %17 = arith.andi %16, %10 : vector<1x128xi1>
    %18 = vector.broadcast %6 : i32 to vector<1x128xi32>
    %19 = arith.addi %8, %18 : vector<1x128xi32>
    %20 = arith.select %17, %19, %8 : vector<1x128xi1>, vector<1x128xi32>
    %c1_i32_6 = arith.constant 1 : i32
    %21 = vector.broadcast %c1_i32_6 : i32 to vector<1x128xi32>
    %22 = arith.cmpi sge, %20, %21 : vector<1x128xi32>
    %c14_i32 = arith.constant 14 : i32
    %23 = vector.broadcast %c14_i32 : i32 to vector<1x128xi32>
    %24 = arith.cmpi sle, %20, %23 : vector<1x128xi32>
    %c13_i32 = arith.constant 13 : i32
    %25 = vector.broadcast %c13_i32 : i32 to vector<1x128xi32>
    %26 = arith.cmpi sle, %20, %25 : vector<1x128xi32>
    %c0_7 = arith.constant 0 : index
    %c0_8 = arith.constant 0 : index
    %c0_9 = arith.constant 0 : index
    %27 = vector.load %arg1[%c0_7, %c0_8, %c0_9] : memref<1x4x128xf32, #tpu.memory_space<vmem>>, vector<1x4x128xf32>
    %28 = vector.shape_cast %27 : vector<1x4x128xf32> to vector<4x128xf32>
    %c0_10 = arith.constant 0 : index
    %c0_11 = arith.constant 0 : index
    %29 = vector.load %arg3[%c0_10, %c0_11] : memref<24x1xf32, #tpu.memory_space<vmem>>, vector<24x1xf32>
    %c0_12 = arith.constant 0 : index
    %c17 = arith.constant 17 : index
    %30 = vector.load %arg5[%c0_12, %c17] : memref<4x179xf32, #tpu.memory_space<vmem>>, vector<4x128xf32>
    tpu.vector_store %arg5[%c0_12, %c17], %28 {strides = array<i32>} : memref<4x179xf32, #tpu.memory_space<vmem>>, vector<4x128xf32>,
    %c0_13 = arith.constant 0 : index
    %c0_14 = arith.constant 0 : index
    %31 = vector.load %arg5[%c0_13, %c0_14] : memref<4x179xf32, #tpu.memory_space<vmem>>, vector<4x128xf32>
    %cst_15 = arith.constant 0.000000e+00 : f32
    %32 = vector.shape_cast %22 : vector<1x128xi1> to vector<1x128xi1>
    %33 = vector.broadcast %32 : vector<1x128xi1> to vector<4x128xi1>
    %34 = vector.broadcast %cst_15 : f32 to vector<4x128xf32>
    %35 = arith.select %33, %31, %34 : vector<4x128xi1>, vector<4x128xf32>
    %c0_16 = arith.constant 0 : index
    %c0_17 = arith.constant 0 : index
    %c0_18 = arith.constant 0 : index
    %36 = vector.load %arg2[%c0_16, %c0_17, %c0_18] : memref<16x24x4xf32, #tpu.memory_space<vmem>>, vector<1x24x4xf32>
    %37 = vector.shape_cast %36 : vector<1x24x4xf32> to vector<24x4xf32>
    %cst_19 = arith.constant dense<0.000000e+00> : vector<24x128xf32>
    %38 = tpu.matmul %37, %35, %cst_19 {dimension_numbers = #tpu.dot_dimension_numbers<[1], [0], [0], [1], [0, 0, 1, 1], [], []>} : vector<24x4xf32>, vector<4x128xf32>, vector<24x128xf32> -> vector<24x128xf32>
    %c0_20 = arith.constant 0 : index
    %c1 = arith.constant 1 : index
    %39 = vector.load %arg5[%c0_20, %c1] : memref<4x179xf32, #tpu.memory_space<vmem>>, vector<4x128xf32>
    %c1_21 = arith.constant 1 : index
    %c0_22 = arith.constant 0 : index
    %c0_23 = arith.constant 0 : index
    %40 = vector.load %arg2[%c1_21, %c0_22, %c0_23] : memref<16x24x4xf32, #tpu.memory_space<vmem>>, vector<1x24x4xf32>
    %41 = vector.shape_cast %40 : vector<1x24x4xf32> to vector<24x4xf32>
    %cst_24 = arith.constant dense<0.000000e+00> : vector<24x128xf32>
    %42 = tpu.matmul %41, %39, %cst_24 {dimension_numbers = #tpu.dot_dimension_numbers<[1], [0], [0], [1], [0, 0, 1, 1], [], []>} : vector<24x4xf32>, vector<4x128xf32>, vector<24x128xf32> -> vector<24x128xf32>
    %43 = arith.addf %38, %42 : vector<24x128xf32>
    %c0_25 = arith.constant 0 : index
    %c2 = arith.constant 2 : index
    %44 = vector.load %arg5[%c0_25, %c2] : memref<4x179xf32, #tpu.memory_space<vmem>>, vector<4x128xf32>
    %cst_26 = arith.constant 0.000000e+00 : f32
    %45 = vector.shape_cast %24 : vector<1x128xi1> to vector<1x128xi1>
    %46 = vector.broadcast %45 : vector<1x128xi1> to vector<4x128xi1>
    %47 = vector.broadcast %cst_26 : f32 to vector<4x128xf32>
    %48 = arith.select %46, %44, %47 : vector<4x128xi1>, vector<4x128xf32>
    %c2_27 = arith.constant 2 : index
    %c0_28 = arith.constant 0 : index
    %c0_29 = arith.constant 0 : index
    %49 = vector.load %arg2[%c2_27, %c0_28, %c0_29] : memref<16x24x4xf32, #tpu.memory_space<vmem>>, vector<1x24x4xf32>
    %50 = vector.shape_cast %49 : vector<1x24x4xf32> to vector<24x4xf32>
    %cst_30 = arith.constant dense<0.000000e+00> : vector<24x128xf32>
    %51 = tpu.matmul %50, %48, %cst_30 {dimension_numbers = #tpu.dot_dimension_numbers<[1], [0], [0], [1], [0, 0, 1, 1], [], []>} : vector<24x4xf32>, vector<4x128xf32>, vector<24x128xf32> -> vector<24x128xf32>
    %52 = arith.addf %43, %51 : vector<24x128xf32>
    %c0_31 = arith.constant 0 : index
    %c3 = arith.constant 3 : index
    %53 = vector.load %arg5[%c0_31, %c3] : memref<4x179xf32, #tpu.memory_space<vmem>>, vector<4x128xf32>
    %cst_32 = arith.constant 0.000000e+00 : f32
    %54 = vector.shape_cast %26 : vector<1x128xi1> to vector<1x128xi1>
    %55 = vector.broadcast %54 : vector<1x128xi1> to vector<4x128xi1>
    %56 = vector.broadcast %cst_32 : f32 to vector<4x128xf32>
    %57 = arith.select %55, %53, %56 : vector<4x128xi1>, vector<4x128xf32>
    %c3_33 = arith.constant 3 : index
    %c0_34 = arith.constant 0 : index
    %c0_35 = arith.constant 0 : index
    %58 = vector.load %arg2[%c3_33, %c0_34, %c0_35] : memref<16x24x4xf32, #tpu.memory_space<vmem>>, vector<1x24x4xf32>
    %59 = vector.shape_cast %58 : vector<1x24x4xf32> to vector<24x4xf32>
    %cst_36 = arith.constant dense<0.000000e+00> : vector<24x128xf32>
    %60 = tpu.matmul %59, %57, %cst_36 {dimension_numbers = #tpu.dot_dimension_numbers<[1], [0], [0], [1], [0, 0, 1, 1], [], []>} : vector<24x4xf32>, vector<4x128xf32>, vector<24x128xf32> -> vector<24x128xf32>
    %61 = arith.addf %52, %60 : vector<24x128xf32>
    %c0_37 = arith.constant 0 : index
    %c16 = arith.constant 16 : index
    %62 = vector.load %arg5[%c0_37, %c16] : memref<4x179xf32, #tpu.memory_space<vmem>>, vector<4x128xf32>
    %cst_38 = arith.constant 0.000000e+00 : f32
    %63 = vector.shape_cast %22 : vector<1x128xi1> to vector<1x128xi1>
    %64 = vector.broadcast %63 : vector<1x128xi1> to vector<4x128xi1>
    %65 = vector.broadcast %cst_38 : f32 to vector<4x128xf32>
    %66 = arith.select %64, %62, %65 : vector<4x128xi1>, vector<4x128xf32>
    %c4 = arith.constant 4 : index
    %c0_39 = arith.constant 0 : index
    %c0_40 = arith.constant 0 : index
    %67 = vector.load %arg2[%c4, %c0_39, %c0_40] : memref<16x24x4xf32, #tpu.memory_space<vmem>>, vector<1x24x4xf32>
    %68 = vector.shape_cast %67 : vector<1x24x4xf32> to vector<24x4xf32>
    %cst_41 = arith.constant dense<0.000000e+00> : vector<24x128xf32>
    %69 = tpu.matmul %68, %66, %cst_41 {dimension_numbers = #tpu.dot_dimension_numbers<[1], [0], [0], [1], [0, 0, 1, 1], [], []>} : vector<24x4xf32>, vector<4x128xf32>, vector<24x128xf32> -> vector<24x128xf32>
    %70 = arith.addf %61, %69 : vector<24x128xf32>
    %c0_42 = arith.constant 0 : index
    %c17_43 = arith.constant 17 : index
    %71 = vector.load %arg5[%c0_42, %c17_43] : memref<4x179xf32, #tpu.memory_space<vmem>>, vector<4x128xf32>
    %c5 = arith.constant 5 : index
    %c0_44 = arith.constant 0 : index
    %c0_45 = arith.constant 0 : index
    %72 = vector.load %arg2[%c5, %c0_44, %c0_45] : memref<16x24x4xf32, #tpu.memory_space<vmem>>, vector<1x24x4xf32>
    %73 = vector.shape_cast %72 : vector<1x24x4xf32> to vector<24x4xf32>
    %cst_46 = arith.constant dense<0.000000e+00> : vector<24x128xf32>
    %74 = tpu.matmul %73, %71, %cst_46 {dimension_numbers = #tpu.dot_dimension_numbers<[1], [0], [0], [1], [0, 0, 1, 1], [], []>} : vector<24x4xf32>, vector<4x128xf32>, vector<24x128xf32> -> vector<24x128xf32>
    %75 = arith.addf %70, %74 : vector<24x128xf32>
    %c0_47 = arith.constant 0 : index
    %c18 = arith.constant 18 : index
    %76 = vector.load %arg5[%c0_47, %c18] : memref<4x179xf32, #tpu.memory_space<vmem>>, vector<4x128xf32>
    %cst_48 = arith.constant 0.000000e+00 : f32
    %77 = vector.shape_cast %24 : vector<1x128xi1> to vector<1x128xi1>
    %78 = vector.broadcast %77 : vector<1x128xi1> to vector<4x128xi1>
    %79 = vector.broadcast %cst_48 : f32 to vector<4x128xf32>
    %80 = arith.select %78, %76, %79 : vector<4x128xi1>, vector<4x128xf32>
    %c6 = arith.constant 6 : index
    %c0_49 = arith.constant 0 : index
    %c0_50 = arith.constant 0 : index
    %81 = vector.load %arg2[%c6, %c0_49, %c0_50] : memref<16x24x4xf32, #tpu.memory_space<vmem>>, vector<1x24x4xf32>
    %82 = vector.shape_cast %81 : vector<1x24x4xf32> to vector<24x4xf32>
    %cst_51 = arith.constant dense<0.000000e+00> : vector<24x128xf32>
    %83 = tpu.matmul %82, %80, %cst_51 {dimension_numbers = #tpu.dot_dimension_numbers<[1], [0], [0], [1], [0, 0, 1, 1], [], []>} : vector<24x4xf32>, vector<4x128xf32>, vector<24x128xf32> -> vector<24x128xf32>
    %84 = arith.addf %75, %83 : vector<24x128xf32>
    %c0_52 = arith.constant 0 : index
    %c19 = arith.constant 19 : index
    %85 = vector.load %arg5[%c0_52, %c19] : memref<4x179xf32, #tpu.memory_space<vmem>>, vector<4x128xf32>
    %cst_53 = arith.constant 0.000000e+00 : f32
    %86 = vector.shape_cast %26 : vector<1x128xi1> to vector<1x128xi1>
    %87 = vector.broadcast %86 : vector<1x128xi1> to vector<4x128xi1>
    %88 = vector.broadcast %cst_53 : f32 to vector<4x128xf32>
    %89 = arith.select %87, %85, %88 : vector<4x128xi1>, vector<4x128xf32>
    %c7 = arith.constant 7 : index
    %c0_54 = arith.constant 0 : index
    %c0_55 = arith.constant 0 : index
    %90 = vector.load %arg2[%c7, %c0_54, %c0_55] : memref<16x24x4xf32, #tpu.memory_space<vmem>>, vector<1x24x4xf32>
    %91 = vector.shape_cast %90 : vector<1x24x4xf32> to vector<24x4xf32>
    %cst_56 = arith.constant dense<0.000000e+00> : vector<24x128xf32>
    %92 = tpu.matmul %91, %89, %cst_56 {dimension_numbers = #tpu.dot_dimension_numbers<[1], [0], [0], [1], [0, 0, 1, 1], [], []>} : vector<24x4xf32>, vector<4x128xf32>, vector<24x128xf32> -> vector<24x128xf32>
    %93 = arith.addf %84, %92 : vector<24x128xf32>
    %c0_57 = arith.constant 0 : index
    %c32 = arith.constant 32 : index
    %94 = vector.load %arg5[%c0_57, %c32] : memref<4x179xf32, #tpu.memory_space<vmem>>, vector<4x128xf32>
    %cst_58 = arith.constant 0.000000e+00 : f32
    %95 = vector.shape_cast %22 : vector<1x128xi1> to vector<1x128xi1>
    %96 = vector.broadcast %95 : vector<1x128xi1> to vector<4x128xi1>
    %97 = vector.broadcast %cst_58 : f32 to vector<4x128xf32>
    %98 = arith.select %96, %94, %97 : vector<4x128xi1>, vector<4x128xf32>
    %c8 = arith.constant 8 : index
    %c0_59 = arith.constant 0 : index
    %c0_60 = arith.constant 0 : index
    %99 = vector.load %arg2[%c8, %c0_59, %c0_60] : memref<16x24x4xf32, #tpu.memory_space<vmem>>, vector<1x24x4xf32>
    %100 = vector.shape_cast %99 : vector<1x24x4xf32> to vector<24x4xf32>
    %cst_61 = arith.constant dense<0.000000e+00> : vector<24x128xf32>
    %101 = tpu.matmul %100, %98, %cst_61 {dimension_numbers = #tpu.dot_dimension_numbers<[1], [0], [0], [1], [0, 0, 1, 1], [], []>} : vector<24x4xf32>, vector<4x128xf32>, vector<24x128xf32> -> vector<24x128xf32>
    %102 = arith.addf %93, %101 : vector<24x128xf32>
    %c0_62 = arith.constant 0 : index
    %c33 = arith.constant 33 : index
    %103 = vector.load %arg5[%c0_62, %c33] : memref<4x179xf32, #tpu.memory_space<vmem>>, vector<4x128xf32>
    %c9 = arith.constant 9 : index
    %c0_63 = arith.constant 0 : index
    %c0_64 = arith.constant 0 : index
    %104 = vector.load %arg2[%c9, %c0_63, %c0_64] : memref<16x24x4xf32, #tpu.memory_space<vmem>>, vector<1x24x4xf32>
    %105 = vector.shape_cast %104 : vector<1x24x4xf32> to vector<24x4xf32>
    %cst_65 = arith.constant dense<0.000000e+00> : vector<24x128xf32>
    %106 = tpu.matmul %105, %103, %cst_65 {dimension_numbers = #tpu.dot_dimension_numbers<[1], [0], [0], [1], [0, 0, 1, 1], [], []>} : vector<24x4xf32>, vector<4x128xf32>, vector<24x128xf32> -> vector<24x128xf32>
    %107 = arith.addf %102, %106 : vector<24x128xf32>
    %c0_66 = arith.constant 0 : index
    %c34 = arith.constant 34 : index
    %108 = vector.load %arg5[%c0_66, %c34] : memref<4x179xf32, #tpu.memory_space<vmem>>, vector<4x128xf32>
    %cst_67 = arith.constant 0.000000e+00 : f32
    %109 = vector.shape_cast %24 : vector<1x128xi1> to vector<1x128xi1>
    %110 = vector.broadcast %109 : vector<1x128xi1> to vector<4x128xi1>
    %111 = vector.broadcast %cst_67 : f32 to vector<4x128xf32>
    %112 = arith.select %110, %108, %111 : vector<4x128xi1>, vector<4x128xf32>
    %c10 = arith.constant 10 : index
    %c0_68 = arith.constant 0 : index
    %c0_69 = arith.constant 0 : index
    %113 = vector.load %arg2[%c10, %c0_68, %c0_69] : memref<16x24x4xf32, #tpu.memory_space<vmem>>, vector<1x24x4xf32>
    %114 = vector.shape_cast %113 : vector<1x24x4xf32> to vector<24x4xf32>
    %cst_70 = arith.constant dense<0.000000e+00> : vector<24x128xf32>
    %115 = tpu.matmul %114, %112, %cst_70 {dimension_numbers = #tpu.dot_dimension_numbers<[1], [0], [0], [1], [0, 0, 1, 1], [], []>} : vector<24x4xf32>, vector<4x128xf32>, vector<24x128xf32> -> vector<24x128xf32>
    %116 = arith.addf %107, %115 : vector<24x128xf32>
    %c0_71 = arith.constant 0 : index
    %c35 = arith.constant 35 : index
    %117 = vector.load %arg5[%c0_71, %c35] : memref<4x179xf32, #tpu.memory_space<vmem>>, vector<4x128xf32>
    %cst_72 = arith.constant 0.000000e+00 : f32
    %118 = vector.shape_cast %26 : vector<1x128xi1> to vector<1x128xi1>
    %119 = vector.broadcast %118 : vector<1x128xi1> to vector<4x128xi1>
    %120 = vector.broadcast %cst_72 : f32 to vector<4x128xf32>
    %121 = arith.select %119, %117, %120 : vector<4x128xi1>, vector<4x128xf32>
    %c11 = arith.constant 11 : index
    %c0_73 = arith.constant 0 : index
    %c0_74 = arith.constant 0 : index
    %122 = vector.load %arg2[%c11, %c0_73, %c0_74] : memref<16x24x4xf32, #tpu.memory_space<vmem>>, vector<1x24x4xf32>
    %123 = vector.shape_cast %122 : vector<1x24x4xf32> to vector<24x4xf32>
    %cst_75 = arith.constant dense<0.000000e+00> : vector<24x128xf32>
    %124 = tpu.matmul %123, %121, %cst_75 {dimension_numbers = #tpu.dot_dimension_numbers<[1], [0], [0], [1], [0, 0, 1, 1], [], []>} : vector<24x4xf32>, vector<4x128xf32>, vector<24x128xf32> -> vector<24x128xf32>
    %125 = arith.addf %116, %124 : vector<24x128xf32>
    %c0_76 = arith.constant 0 : index
    %c48 = arith.constant 48 : index
    %126 = vector.load %arg5[%c0_76, %c48] : memref<4x179xf32, #tpu.memory_space<vmem>>, vector<4x128xf32>
    %cst_77 = arith.constant 0.000000e+00 : f32
    %127 = vector.shape_cast %22 : vector<1x128xi1> to vector<1x128xi1>
    %128 = vector.broadcast %127 : vector<1x128xi1> to vector<4x128xi1>
    %129 = vector.broadcast %cst_77 : f32 to vector<4x128xf32>
    %130 = arith.select %128, %126, %129 : vector<4x128xi1>, vector<4x128xf32>
    %c12 = arith.constant 12 : index
    %c0_78 = arith.constant 0 : index
    %c0_79 = arith.constant 0 : index
    %131 = vector.load %arg2[%c12, %c0_78, %c0_79] : memref<16x24x4xf32, #tpu.memory_space<vmem>>, vector<1x24x4xf32>
    %132 = vector.shape_cast %131 : vector<1x24x4xf32> to vector<24x4xf32>
    %cst_80 = arith.constant dense<0.000000e+00> : vector<24x128xf32>
    %133 = tpu.matmul %132, %130, %cst_80 {dimension_numbers = #tpu.dot_dimension_numbers<[1], [0], [0], [1], [0, 0, 1, 1], [], []>} : vector<24x4xf32>, vector<4x128xf32>, vector<24x128xf32> -> vector<24x128xf32>
    %134 = arith.addf %125, %133 : vector<24x128xf32>
    %c0_81 = arith.constant 0 : index
    %c49 = arith.constant 49 : index
    %135 = vector.load %arg5[%c0_81, %c49] : memref<4x179xf32, #tpu.memory_space<vmem>>, vector<4x128xf32>
    %c13 = arith.constant 13 : index
    %c0_82 = arith.constant 0 : index
    %c0_83 = arith.constant 0 : index
    %136 = vector.load %arg2[%c13, %c0_82, %c0_83] : memref<16x24x4xf32, #tpu.memory_space<vmem>>, vector<1x24x4xf32>
    %137 = vector.shape_cast %136 : vector<1x24x4xf32> to vector<24x4xf32>
    %cst_84 = arith.constant dense<0.000000e+00> : vector<24x128xf32>
    %138 = tpu.matmul %137, %135, %cst_84 {dimension_numbers = #tpu.dot_dimension_numbers<[1], [0], [0], [1], [0, 0, 1, 1], [], []>} : vector<24x4xf32>, vector<4x128xf32>, vector<24x128xf32> -> vector<24x128xf32>
    %139 = arith.addf %134, %138 : vector<24x128xf32>
    %c0_85 = arith.constant 0 : index
    %c50 = arith.constant 50 : index
    %140 = vector.load %arg5[%c0_85, %c50] : memref<4x179xf32, #tpu.memory_space<vmem>>, vector<4x128xf32>
    %cst_86 = arith.constant 0.000000e+00 : f32
    %141 = vector.shape_cast %24 : vector<1x128xi1> to vector<1x128xi1>
    %142 = vector.broadcast %141 : vector<1x128xi1> to vector<4x128xi1>
    %143 = vector.broadcast %cst_86 : f32 to vector<4x128xf32>
    %144 = arith.select %142, %140, %143 : vector<4x128xi1>, vector<4x128xf32>
    %c14 = arith.constant 14 : index
    %c0_87 = arith.constant 0 : index
    %c0_88 = arith.constant 0 : index
    %145 = vector.load %arg2[%c14, %c0_87, %c0_88] : memref<16x24x4xf32, #tpu.memory_space<vmem>>, vector<1x24x4xf32>
    %146 = vector.shape_cast %145 : vector<1x24x4xf32> to vector<24x4xf32>
    %cst_89 = arith.constant dense<0.000000e+00> : vector<24x128xf32>
    %147 = tpu.matmul %146, %144, %cst_89 {dimension_numbers = #tpu.dot_dimension_numbers<[1], [0], [0], [1], [0, 0, 1, 1], [], []>} : vector<24x4xf32>, vector<4x128xf32>, vector<24x128xf32> -> vector<24x128xf32>
    %148 = arith.addf %139, %147 : vector<24x128xf32>
    %c0_90 = arith.constant 0 : index
    %c51 = arith.constant 51 : index
    %149 = vector.load %arg5[%c0_90, %c51] : memref<4x179xf32, #tpu.memory_space<vmem>>, vector<4x128xf32>
    %cst_91 = arith.constant 0.000000e+00 : f32
    %150 = vector.shape_cast %26 : vector<1x128xi1> to vector<1x128xi1>
    %151 = vector.broadcast %150 : vector<1x128xi1> to vector<4x128xi1>
    %152 = vector.broadcast %cst_91 : f32 to vector<4x128xf32>
    %153 = arith.select %151, %149, %152 : vector<4x128xi1>, vector<4x128xf32>
    %c15 = arith.constant 15 : index
    %c0_92 = arith.constant 0 : index
    %c0_93 = arith.constant 0 : index
    %154 = vector.load %arg2[%c15, %c0_92, %c0_93] : memref<16x24x4xf32, #tpu.memory_space<vmem>>, vector<1x24x4xf32>
    %155 = vector.shape_cast %154 : vector<1x24x4xf32> to vector<24x4xf32>
    %cst_94 = arith.constant dense<0.000000e+00> : vector<24x128xf32>
    %156 = tpu.matmul %155, %153, %cst_94 {dimension_numbers = #tpu.dot_dimension_numbers<[1], [0], [0], [1], [0, 0, 1, 1], [], []>} : vector<24x4xf32>, vector<4x128xf32>, vector<24x128xf32> -> vector<24x128xf32>
    %157 = arith.addf %148, %156 : vector<24x128xf32>
    %158 = vector.broadcast %29 : vector<24x1xf32> to vector<24x128xf32>
    %159 = arith.addf %157, %158 : vector<24x128xf32>
    %c0_95 = arith.constant 0 : index
    %c0_96 = arith.constant 0 : index
    %c0_97 = arith.constant 0 : index
    %160 = vector.load %arg4[%c0_95, %c0_96, %c0_97] : memref<1x24x128xf32, #tpu.memory_space<vmem>>, vector<1x24x128xf32>
    %161 = vector.shape_cast %160 : vector<1x24x128xf32> to vector<24x128xf32>
    %162 = vector.shape_cast %159 : vector<24x128xf32> to vector<1x24x128xf32>
    tpu.vector_store %arg4[%c0_95, %c0_96, %c0_97], %162 {strides = array<i32>} : memref<1x24x128xf32, #tpu.memory_space<vmem>>, vector<1x24x128xf32>,
    return
  }
  func.func @transform_0(%arg0: i32) -> (i32, i32, i32) {
    %c0_i32 = arith.constant 0 : i32
    %c0_i32_0 = arith.constant 0 : i32
    %c0_i32_1 = arith.constant 0 : i32
    return %arg0, %c0_i32, %c0_i32_0 : i32, i32, i32
  }
  func.func @transform_1(%arg0: i32) -> (i32, i32, i32) {
    %c0_i32 = arith.constant 0 : i32
    %c0_i32_0 = arith.constant 0 : i32
    %c0_i32_1 = arith.constant 0 : i32
    %c0_i32_2 = arith.constant 0 : i32
    return %c0_i32, %c0_i32_0, %c0_i32_1 : i32, i32, i32
  }
  func.func @transform_2(%arg0: i32) -> (i32, i32) {
    %c0_i32 = arith.constant 0 : i32
    %c0_i32_0 = arith.constant 0 : i32
    %c0_i32_1 = arith.constant 0 : i32
    return %c0_i32, %c0_i32_0 : i32, i32
  }
  func.func @transform_3(%arg0: i32) -> (i32, i32, i32) {
    %c0_i32 = arith.constant 0 : i32
    %c0_i32_0 = arith.constant 0 : i32
    %c0_i32_1 = arith.constant 0 : i32
    return %arg0, %c0_i32, %c0_i32_0 : i32, i32, i32
  }
}

</mosaic_0001>

<llo_original>
// kernel: tpu_custom_call.1
$region0: #{tpu_custom_call.1}
  #allocation0 [shape = 'u32[]', space=smem, size = 0x4, offset = 0x4, fixed_abs, tag = 'smem constant byte address 0x4 - core index']
  #allocation1 [shape = 'u32[144,128]{1,0:T(1,128)}', space=vmem, size = 0x12000, scoped, tag = 'internal scratch']
  #allocation2 [shape = 'f32[4,179]{1,0:T(4,128)}', space=vmem, size = 0x1000, scoped, tag = 'scratch operand']
  %s0 = inlined_call_operand.vmem [shape: f32[2,4,128], index: 0, kind: input, shape index: {}]
  %s1 = inlined_call_operand.vmem [shape: f32[16,24,4], index: 1, kind: input, shape index: {}]
  %s2 = inlined_call_operand.vmem [shape: f32[24,1], index: 2, kind: input, shape index: {}]
  %s3 = inlined_call_operand.hbm [shape: f32[2,24,128], index: 3, kind: output, shape index: {}]
  %s4 = sld [smem:[#allocation0]]
  $region45: #{tpu_custom_call.1} parent=0
    _
  %s6 = ssub.s32 1, %s4
  %s7 = scalar_select 0, %s6, %s4
  $region1: #{tpu_custom_call.1} parent=0
    #allocation3 [shape = 'u8[24576]{0}', space=vmem, size = 0x6000, scoped, tag = 'output window, operand 0']
    #allocation4 [shape = 's32[2]{0}', space=sflag, size = 0x8, scoped, tag = 'scoped memory for tpu_custom_call.1']
    %8 = vsyncpa [#allocation4], 0
    %s9 = scalar_lea.sflag [#allocation4], 1
    %10 = vsyncpa %s9, 0
    loop: start=0, step=1, limit=4
    $region2: #{tpu_custom_call.1} parent=1 // loop_pre_header
      _
    $region3: #{tpu_custom_call.1} parent=1 // loop_header
      %s12 = sphi 0, %s16
      %p13 = scmp.ge.s32.totalorder %s12, 4
      %s22 = sphi 0, %s24
      %s25 = sphi 0, %s22
      %s26 = sphi 0, %s25
      %s42 = sphi 0, %s26
      %s46 = sphi 0, %s46
      %s48 = sphi 0, %s46
      %s49 = sphi 0, %s48
      %s63 = sphi 0, %s49
      %s67 = sphi 0, %s67
      %s69 = sphi 0, %s67
      %s70 = sphi 0, %s69
      %s84 = sphi 0, %s70
      %s90 = sphi 0, %s92
      %s93 = sphi 0, %s90
      %s94 = sphi 0, %s93
      %s110 = sphi 0, %s94
    $region4: #{tpu_custom_call.1} parent=1 // loop_header_branch
      %15 = sbr.rel (%p13) target = $region8
    $region5: #{tpu_custom_call.1} parent=1 // loop_body
      %s17 = ssub.s32 %s12, 1
      %s18 = ssub.s32 %s12, 2
      %s19 = sadd.s32 %s12, 1
      %s20 = ssub.s32 %s12, %s19
      %p21 = scmp.eq.s32.totalorder %s20, 0
      %s23 = sadd.s32 %s22, 1
      %s24 = scalar_select %p21, %s22, %s23
      %p27 = pneg %p21
      %p28 = scmp.eq.s32.totalorder %s12, 1
      %p29 = por %p27, %p28
      %p30 = scmp.ne.s32.totalorder %s22, %s25
      %p31 = scmp.eq.s32.totalorder %s12, 0
      %p32 = por %p30, %p31
      %p33 = scmp.ne.s32.totalorder %s22, %s25
      %p34 = scmp.eq.s32.totalorder %s17, 1
      %p35 = por %p33, %p34
      %p36 = scmp.ne.s32.totalorder %s25, %s26
      %p37 = scmp.eq.s32.totalorder %s17, 0
      %p38 = por %p36, %p37
      %p39 = scmp.ne.s32.totalorder %s25, %s26
      %p40 = scmp.eq.s32.totalorder %s18, 1
      %p41 = por %p39, %p40
      %p43 = scmp.ne.s32.totalorder %s26, %s42
      %p44 = scmp.eq.s32.totalorder %s18, 0
      %p45 = por %p43, %p44
      %s47 = sadd.s32 %s46, 1
      %p50 = scmp.eq.s32.totalorder %s12, 1
      %p51 = scmp.ne.s32.totalorder %s46, %s48
      %p52 = scmp.eq.s32.totalorder %s12, 0
      %p53 = por %p51, %p52
      %p54 = scmp.ne.s32.totalorder %s46, %s48
      %p55 = scmp.eq.s32.totalorder %s17, 1
      %p56 = por %p54, %p55
      %p57 = scmp.ne.s32.totalorder %s48, %s49
      %p58 = scmp.eq.s32.totalorder %s17, 0
      %p59 = por %p57, %p58
      %p60 = scmp.ne.s32.totalorder %s48, %s49
      %p61 = scmp.eq.s32.totalorder %s18, 1
      %p62 = por %p60, %p61
      %p64 = scmp.ne.s32.totalorder %s49, %s63
      %p65 = scmp.eq.s32.totalorder %s18, 0
      %p66 = por %p64, %p65
      %s68 = sadd.s32 %s67, 1
      %p71 = scmp.eq.s32.totalorder %s12, 1
      %p72 = scmp.ne.s32.totalorder %s67, %s69
      %p73 = scmp.eq.s32.totalorder %s12, 0
      %p74 = por %p72, %p73
      %p75 = scmp.ne.s32.totalorder %s67, %s69
      %p76 = scmp.eq.s32.totalorder %s17, 1
      %p77 = por %p75, %p76
      %p78 = scmp.ne.s32.totalorder %s69, %s70
      %p79 = scmp.eq.s32.totalorder %s17, 0
      %p80 = por %p78, %p79
      %p81 = scmp.ne.s32.totalorder %s69, %s70
      %p82 = scmp.eq.s32.totalorder %s18, 1
      %p83 = por %p81, %p82
      %p85 = scmp.ne.s32.totalorder %s70, %s84
      %p86 = scmp.eq.s32.totalorder %s18, 0
      %p87 = por %p85, %p86
      %s88 = ssub.s32 %s12, %s19
      %p89 = scmp.eq.s32.totalorder %s88, 0
      %s91 = sadd.s32 %s90, 1
      %s92 = scalar_select %p89, %s90, %s91
      %p95 = pneg %p89
      %p96 = scmp.eq.s32.totalorder %s12, 1
      %p97 = por %p95, %p96
      %p98 = scmp.ne.s32.totalorder %s90, %s93
      %p99 = scmp.eq.s32.totalorder %s12, 0
      %p100 = por %p98, %p99
      %p101 = scmp.ne.s32.totalorder %s90, %s93
      %p102 = scmp.eq.s32.totalorder %s17, 1
      %p103 = por %p101, %p102
      %p104 = scmp.ne.s32.totalorder %s93, %s94
      %p105 = scmp.eq.s32.totalorder %s17, 0
      %p106 = por %p104, %p105
      %p107 = scmp.ne.s32.totalorder %s93, %s94
      %p108 = scmp.eq.s32.totalorder %s18, 1
      %p109 = por %p107, %p108
      %p111 = scmp.ne.s32.totalorder %s94, %s110
      %p112 = scmp.eq.s32.totalorder %s18, 0
      %p113 = por %p111, %p112
      %p114 = scmp.le.s32.totalorder 1, %s12
      %p115 = scmp.lt.s32.totalorder %s12, 3
      %p116 = pnand %p114, %p115
      %p117 = pneg %p116
      // Predicated region
      $region9: #{tpu_custom_call.1} parent=5 // pred_check
        _
      $region10: #{tpu_custom_call.1} parent=5 // pred_check_branch
        %119 = sbr.rel (%p116) target = $region12
      $region11: #{tpu_custom_call.1} parent=5 // pred_region
        %s120 = ssub.s32 %s12, 1
        // Predicated region
        $region13: #{tpu_custom_call.1} parent=11 // pred_check
          %p121 = pneg %p59
        $region14: #{tpu_custom_call.1} parent=11 // pred_check_branch
          %123 = sbr.rel (%p121) target = $region16
        $region15: #{tpu_custom_call.1} parent=11 // pred_region
          _
        $region16: #{tpu_custom_call.1} parent=11 // pred_fallthru
          _
        // Predicated region
        $region17: #{tpu_custom_call.1} parent=11 // pred_check
          %p124 = pneg %p80
        $region18: #{tpu_custom_call.1} parent=11 // pred_check_branch
          %126 = sbr.rel (%p124) target = $region20
        $region19: #{tpu_custom_call.1} parent=11 // pred_region
          _
        $region20: #{tpu_custom_call.1} parent=11 // pred_fallthru
          _
      $region12: #{tpu_custom_call.1} parent=5 // pred_fallthru
        _
      %p127 = scmp.lt.s32.totalorder %s12, 2
      // Predicated region
      $region21: #{tpu_custom_call.1} parent=5 // pred_check
        %p128 = pneg %p127
      $region22: #{tpu_custom_call.1} parent=5 // pred_check_branch
        %130 = sbr.rel (%p128) target = $region24
      $region23: #{tpu_custom_call.1} parent=5 // pred_region
        // Predicated region
        $region25: #{tpu_custom_call.1} parent=23 // pred_check
          %p131 = pneg %p32
        $region26: #{tpu_custom_call.1} parent=23 // pred_check_branch
          %133 = sbr.rel (%p131) target = $region28
        $region27: #{tpu_custom_call.1} parent=23 // pred_region
          %p134 = scmp.lt.s32.totalorder %s12, 1
          %s135 = scalar_select %p134, %s12, 1
          %s136 = smul.addr %s135, 4
          %s137 = scalar_lea.vmem %s0, %s136
        $region28: #{tpu_custom_call.1} parent=23 // pred_fallthru
          _
      $region24: #{tpu_custom_call.1} parent=5 // pred_fallthru
        _
      %p138 = scmp.le.s32.totalorder 1, %s12
      %p139 = scmp.lt.s32.totalorder %s12, 3
      %p140 = pnand %p138, %p139
      %p141 = pneg %p140
      // Predicated region
      $region29: #{tpu_custom_call.1} parent=5 // pred_check
        _
      $region30: #{tpu_custom_call.1} parent=5 // pred_check_branch
        %143 = sbr.rel (%p140) target = $region32
      $region31: #{tpu_custom_call.1} parent=5 // pred_region
        %s144 = ssub.s32 %s12, 1
        %p145 = scmp.lt.s32.totalorder %s17, 1
        %s146 = scalar_select %p145, %s17, 1
        %s147 = smul.addr %s146, 4
        %s148 = scalar_lea.vmem %s0, %s147
        %p149 = pneg %p38
        %p150 = pneg %p35
        %p151 = pneg %p59
        %p152 = pneg %p56
        %p153 = pneg %p80
        %p154 = pneg %p77
        %p155 = pneg %p106
        %p156 = pneg %p103
        %s157 = sand.u32 %s93, 1
        %s158 = scalar_lea.sflag [#allocation4], %s157
        %s159 = sand.u32 %s93, 1
        %s160 = smul.addr %s159, 24
        %s161 = scalar_lea.vmem [#allocation3], %s160
        %p162 = scmp.lt.s32.totalorder %s17, 1
        %s163 = scalar_select %p162, %s17, 1
        %s164 = smul.addr %s163, 4
        %s165 = scalar_lea.vmem %s0, %s164
        %vm166 = vcmask 134144
        %167 = vst.msk [vmem:[#allocation2] sm:$0xf] %vm166, 0.0
        %vm168 = vcmask 412808
        %169 = vst.msk [vmem:[#allocation2 + $0x4] sm:$0xf] %vm168, 0.0
        %v170 = vlaneseq
        %v171 = vand.u32 %v170, 127
        %vm172 = vcmp.lt.s32.totalorder %v171, 0
        %v173 = vsub.s32 0, %v171
        %v174 = vsel %vm172, %v173, %v171
        %v175 = vshrl.u32 %v174, 4
        %v176 = vand.u32 %v174, 15
        %v177 = vsub.s32 0, %v176
        %v178 = vsel %vm172, %v177, %v176
        %vm179 = vcmp.ne.s32.totalorder %v178, 0
        %vm180 = vcmp.lt.s32.totalorder %v178, 0
        %vm181 = vmand %vm180, %vm179
        %v182 = vadd.s32 %v178, 16
        %v183 = vsel %vm181, %v182, %v178
        %vm184 = vcmp.ge.s32.totalorder %v183, 1
        %vm185 = vcmp.le.s32.totalorder %v183, 14
        %vm186 = vcmp.le.s32.totalorder %v183, 13
        %v187 = vld [vmem:[%s165] sm:$0xf]
        %v188 = vld [vmem:[%s2] sm:$0xff]
        %v189 = vld [vmem:[%s2 + $0x8] sm:$0xff]
        %v190 = vld [vmem:[%s2 + $0x10] sm:$0xff]
        %192 = vrot.lane.b32.xlu0 %v187, 17
        %v193 = vpop.permute.xlu0 %192
        %v194 = vrot.slane %v193, 4
        %vm195 = vcmask 138240
        %v196 = vsel %vm195, %v194, %v193
        %vm198 = vcmask 1043592
        %vm199 = vcmask 138244
        %vm200 = vmor %vm199, %vm198
        %201 = vst.msk [vmem:[#allocation2] sm:$0xff] %vm200, %v196
        %v202 = vld [vmem:[#allocation2] sm:$0xf]
        %v203 = vsel %vm184, 1, 0
        %vm204 = vcmp.eq.s32.totalorder %v203, 1
        %v205 = vsel %vm204, %v202, 0.0
        %v206 = vld [vmem:[%s1] sm:$0xff]
        %v207 = vld [vmem:[%s1 + $0x8] sm:$0xff]
        %v208 = vld [vmem:[%s1 + $0x10] sm:$0xff]
        %v209 = vld [vmem:[#allocation2] sm:$0xff]
        %s210 = scalar_lea.vmem %s1, 24
        %v211 = vld [vmem:[%s210] sm:$0xff]
        %v212 = vld [vmem:[%s210 + $0x8] sm:$0xff]
        %v213 = vld [vmem:[%s210 + $0x10] sm:$0xff]
        %v215 = vcombine.high %v209, %v209
        %216 = vrot.lane.b32.xlu0 %v209, 127
        %v217 = vpop.permute.xlu0 %216
        %218 = vrot.lane.b32.xlu0 %v215, 127
        %v219 = vpop.permute.xlu0 %218
        %vm220 = vcmask 1039360
        %v221 = vsel %vm220, %v217, %v219
        %vm222 = vcmask 31744
        %v224 = vsel %vm222, %v211, 0
        %v227 = vsel %vm222, %v212, 0
        %v230 = vsel %vm222, %v213, 0
        %vm232 = vcmask 1043456
        %v233 = vsel %vm232, %v221, 0
        %235 = vmatprep.subr.mxu0 0.0
        %236 = vmatpush1.msra.mxu0 %v233
        %237 = vmatprep.subr.mxu0 0.0
        %238 = vmatpush1.msra.mxu0 0.0
        %239 = vmatprep.subr.mxu0 0.0
        %240 = vmatpush1.msra.mxu0 0.0
        %241 = vmatprep.subr.mxu0 0.0
        %242 = vmatpush1.msra.mxu0 0.0
        %243 = vmatprep.subr.mxu0 0.0
        %244 = vmatpush1.msra.mxu0 0.0
        %245 = vmatprep.subr.mxu0 0.0
        %246 = vmatpush1.msra.mxu0 0.0
        %247 = vmatprep.subr.mxu0 0.0
        %248 = vmatpush1.msra.mxu0 0.0
        %249 = vmatprep.subr.mxu0 0.0
        %250 = vmatpush1.msra.mxu0 0.0
        %251 = vmatprep.subr.mxu0 0.0
        %252 = vmatpush1.msra.mxu0 0.0
        %253 = vmatprep.subr.mxu0 0.0
        %254 = vmatpush1.msra.mxu0 0.0
        %255 = vmatprep.subr.mxu0 0.0
        %256 = vmatpush1.msra.mxu0 0.0
        %257 = vmatprep.subr.mxu0 0.0
        %258 = vmatpush1.msra.mxu0 0.0
        %259 = vmatprep.subr.mxu0 0.0
        %260 = vmatpush1.msra.mxu0 0.0
        %261 = vmatprep.subr.mxu0 0.0
        %262 = vmatpush1.msra.mxu0 0.0
        %263 = vmatprep.subr.mxu0 0.0
        %264 = vmatpush1.msra.mxu0 0.0
        %265 = vmatprep.subr.mxu0 0.0
        %266 = vmatpush1.msra.mxu0 0.0
        %267 = vmatprep.subr.mxu0 0.0
        %268 = vmatpush1.msra.mxu0 0.0
        %269 = vmatprep.subr.mxu0 0.0
        %270 = vmatpush1.msra.mxu0 0.0
        %271 = vmatprep.subr.mxu0 0.0
        %272 = vmatpush1.msra.mxu0 0.0
        %273 = vmatprep.subr.mxu0 0.0
        %274 = vmatpush1.msra.mxu0 0.0
        %275 = vmatprep.subr.mxu0 0.0
        %276 = vmatpush1.msra.mxu0 0.0
        %277 = vmatprep.subr.mxu0 0.0
        %278 = vmatpush1.msra.mxu0 0.0
        %279 = vmatprep.subr.mxu0 0.0
        %280 = vmatpush1.msra.mxu0 0.0
        %281 = vmatprep.subr.mxu0 0.0
        %282 = vmatpush1.msra.mxu0 0.0
        %283 = vmatprep.subr.mxu0 0.0
        %284 = vmatpush1.msra.mxu0 0.0
        %285 = vmatprep.subr.mxu0 0.0
        %286 = vmatpush1.msra.mxu0 0.0
        %287 = vmatprep.subr.mxu0 0.0
        %288 = vmatpush1.msra.mxu0 0.0
        %289 = vmatprep.subr.mxu0 0.0
        %290 = vmatpush1.msra.mxu0 0.0
        %291 = vmatprep.subr.mxu0 0.0
        %292 = vmatpush1.msra.mxu0 0.0
        %293 = vmatprep.subr.mxu0 0.0
        %294 = vmatpush1.msra.mxu0 0.0
        %295 = vmatprep.subr.mxu0 0.0
        %296 = vmatpush1.msra.mxu0 0.0
        %297 = vmatprep.subr.mxu0 0.0
        %298 = vmatpush1.msra.mxu0 0.0
        %299 = vmatprep.mubr.f32.mxu0 0.0
        %300 = vmatmul.mubr.f32.gmra.mrb[0].mxu0 %v224
        %v301 = vpop.f32.mrb[0].mxu0
        %v302 = vadd.f32 0.0, %v301
        %v303 = vpop.f32.mrb[0].mxu0
        %304 = vmatprep.mubr.f32.mxu0 0.0
        %305 = vmatmul.mubr.f32.gmra.mrb[0].mxu0 %v227
        %v306 = vpop.f32.mrb[0].mxu0
        %v307 = vadd.f32 0.0, %v306
        %v308 = vpop.f32.mrb[0].mxu0
        %309 = vmatprep.mubr.f32.mxu0 0.0
        %310 = vmatmul.mubr.f32.gmra.mrb[0].mxu0 %v230
        %v311 = vpop.f32.mrb[0].mxu0
        %v312 = vadd.f32 0.0, %v311
        %v313 = vpop.f32.mrb[0].mxu0
        %314 = vdwg.mxu0
        %v316 = vsel %vm222, %v206, 0
        %v319 = vsel %vm222, %v207, 0
        %v322 = vsel %vm222, %v208, 0
        %v325 = vsel %vm232, %v205, 0
        %327 = vmatprep.subr.mxu0 0.0
        %328 = vmatpush1.msra.mxu0 %v325
        %329 = vmatprep.subr.mxu0 0.0
        %330 = vmatpush1.msra.mxu0 0.0
        %331 = vmatprep.subr.mxu0 0.0
        %332 = vmatpush1.msra.mxu0 0.0
        %333 = vmatprep.subr.mxu0 0.0
        %334 = vmatpush1.msra.mxu0 0.0
        %335 = vmatprep.subr.mxu0 0.0
        %336 = vmatpush1.msra.mxu0 0.0
        %337 = vmatprep.subr.mxu0 0.0
        %338 = vmatpush1.msra.mxu0 0.0
        %339 = vmatprep.subr.mxu0 0.0
        %340 = vmatpush1.msra.mxu0 0.0
        %341 = vmatprep.subr.mxu0 0.0
        %342 = vmatpush1.msra.mxu0 0.0
        %343 = vmatprep.subr.mxu0 0.0
        %344 = vmatpush1.msra.mxu0 0.0
        %345 = vmatprep.subr.mxu0 0.0
        %346 = vmatpush1.msra.mxu0 0.0
        %347 = vmatprep.subr.mxu0 0.0
        %348 = vmatpush1.msra.mxu0 0.0
        %349 = vmatprep.subr.mxu0 0.0
        %350 = vmatpush1.msra.mxu0 0.0
        %351 = vmatprep.subr.mxu0 0.0
        %352 = vmatpush1.msra.mxu0 0.0
        %353 = vmatprep.subr.mxu0 0.0
        %354 = vmatpush1.msra.mxu0 0.0
        %355 = vmatprep.subr.mxu0 0.0
        %356 = vmatpush1.msra.mxu0 0.0
        %357 = vmatprep.subr.mxu0 0.0
        %358 = vmatpush1.msra.mxu0 0.0
        %359 = vmatprep.subr.mxu0 0.0
        %360 = vmatpush1.msra.mxu0 0.0
        %361 = vmatprep.subr.mxu0 0.0
        %362 = vmatpush1.msra.mxu0 0.0
        %363 = vmatprep.subr.mxu0 0.0
        %364 = vmatpush1.msra.mxu0 0.0
        %365 = vmatprep.subr.mxu0 0.0
        %366 = vmatpush1.msra.mxu0 0.0
        %367 = vmatprep.subr.mxu0 0.0
        %368 = vmatpush1.msra.mxu0 0.0
        %369 = vmatprep.subr.mxu0 0.0
        %370 = vmatpush1.msra.mxu0 0.0
        %371 = vmatprep.subr.mxu0 0.0
        %372 = vmatpush1.msra.mxu0 0.0
        %373 = vmatprep.subr.mxu0 0.0
        %374 = vmatpush1.msra.mxu0 0.0
        %375 = vmatprep.subr.mxu0 0.0
        %376 = vmatpush1.msra.mxu0 0.0
        %377 = vmatprep.subr.mxu0 0.0
        %378 = vmatpush1.msra.mxu0 0.0
        %379 = vmatprep.subr.mxu0 0.0
        %380 = vmatpush1.msra.mxu0 0.0
        %381 = vmatprep.subr.mxu0 0.0
        %382 = vmatpush1.msra.mxu0 0.0
        %383 = vmatprep.subr.mxu0 0.0
        %384 = vmatpush1.msra.mxu0 0.0
        %385 = vmatprep.subr.mxu0 0.0
        %386 = vmatpush1.msra.mxu0 0.0
        %387 = vmatprep.subr.mxu0 0.0
        %388 = vmatpush1.msra.mxu0 0.0
        %389 = vmatprep.subr.mxu0 0.0
        %390 = vmatpush1.msra.mxu0 0.0
        %391 = vmatprep.mubr.f32.mxu0 0.0
        %392 = vmatmul.mubr.f32.gmra.mrb[0].mxu0 %v316
        %v393 = vpop.f32.mrb[0].mxu0
        %v394 = vadd.f32 %v302, %v393
        %v395 = vpop.f32.mrb[0].mxu0
        %396 = vmatprep.mubr.f32.mxu0 0.0
        %397 = vmatmul.mubr.f32.gmra.mrb[0].mxu0 %v319
        %v398 = vpop.f32.mrb[0].mxu0
        %v399 = vadd.f32 %v307, %v398
        %v400 = vpop.f32.mrb[0].mxu0
        %401 = vmatprep.mubr.f32.mxu0 0.0
        %402 = vmatmul.mubr.f32.gmra.mrb[0].mxu0 %v322
        %v403 = vpop.f32.mrb[0].mxu0
        %v404 = vadd.f32 %v312, %v403
        %v405 = vpop.f32.mrb[0].mxu0
        %406 = vdwg.mxu0
        %v407 = vld [vmem:[#allocation2] sm:$0xff]
        %v408 = vsel %vm185, 1, 0
        %vm409 = vcmp.eq.s32.totalorder %v408, 1
        %v411 = vcombine.high %v407, %v407
        %412 = vrot.lane.b32.xlu0 %v407, 126
        %v413 = vpop.permute.xlu0 %412
        %414 = vrot.lane.b32.xlu0 %v411, 126
        %v415 = vpop.permute.xlu0 %414
        %vm416 = vcmask 1031168
        %v417 = vsel %vm416, %v413, %v415
        %v419 = vsel %vm409, %v417, 0.0
        %s420 = scalar_lea.vmem %s1, 48
        %v421 = vld [vmem:[%s420] sm:$0xff]
        %v422 = vld [vmem:[%s420 + $0x8] sm:$0xff]
        %v423 = vld [vmem:[%s420 + $0x10] sm:$0xff]
        %v425 = vsel %vm222, %v421, 0
        %v428 = vsel %vm222, %v422, 0
        %v431 = vsel %vm222, %v423, 0
        %v434 = vsel %vm232, %v419, 0
        %436 = vmatprep.subr.mxu0 0.0
        %437 = vmatpush1.msra.mxu0 %v434
        %438 = vmatprep.subr.mxu0 0.0
        %439 = vmatpush1.msra.mxu0 0.0
        %440 = vmatprep.subr.mxu0 0.0
        %441 = vmatpush1.msra.mxu0 0.0
        %442 = vmatprep.subr.mxu0 0.0
        %443 = vmatpush1.msra.mxu0 0.0
        %444 = vmatprep.subr.mxu0 0.0
        %445 = vmatpush1.msra.mxu0 0.0
        %446 = vmatprep.subr.mxu0 0.0
        %447 = vmatpush1.msra.mxu0 0.0
        %448 = vmatprep.subr.mxu0 0.0
        %449 = vmatpush1.msra.mxu0 0.0
        %450 = vmatprep.subr.mxu0 0.0
        %451 = vmatpush1.msra.mxu0 0.0
        %452 = vmatprep.subr.mxu0 0.0
        %453 = vmatpush1.msra.mxu0 0.0
        %454 = vmatprep.subr.mxu0 0.0
        %455 = vmatpush1.msra.mxu0 0.0
        %456 = vmatprep.subr.mxu0 0.0
        %457 = vmatpush1.msra.mxu0 0.0
        %458 = vmatprep.subr.mxu0 0.0
        %459 = vmatpush1.msra.mxu0 0.0
        %460 = vmatprep.subr.mxu0 0.0
        %461 = vmatpush1.msra.mxu0 0.0
        %462 = vmatprep.subr.mxu0 0.0
        %463 = vmatpush1.msra.mxu0 0.0
        %464 = vmatprep.subr.mxu0 0.0
        %465 = vmatpush1.msra.mxu0 0.0
        %466 = vmatprep.subr.mxu0 0.0
        %467 = vmatpush1.msra.mxu0 0.0
        %468 = vmatprep.subr.mxu0 0.0
        %469 = vmatpush1.msra.mxu0 0.0
        %470 = vmatprep.subr.mxu0 0.0
        %471 = vmatpush1.msra.mxu0 0.0
        %472 = vmatprep.subr.mxu0 0.0
        %473 = vmatpush1.msra.mxu0 0.0
        %474 = vmatprep.subr.mxu0 0.0
        %475 = vmatpush1.msra.mxu0 0.0
        %476 = vmatprep.subr.mxu0 0.0
        %477 = vmatpush1.msra.mxu0 0.0
        %478 = vmatprep.subr.mxu0 0.0
        %479 = vmatpush1.msra.mxu0 0.0
        %480 = vmatprep.subr.mxu0 0.0
        %481 = vmatpush1.msra.mxu0 0.0
        %482 = vmatprep.subr.mxu0 0.0
        %483 = vmatpush1.msra.mxu0 0.0
        %484 = vmatprep.subr.mxu0 0.0
        %485 = vmatpush1.msra.mxu0 0.0
        %486 = vmatprep.subr.mxu0 0.0
        %487 = vmatpush1.msra.mxu0 0.0
        %488 = vmatprep.subr.mxu0 0.0
        %489 = vmatpush1.msra.mxu0 0.0
        %490 = vmatprep.subr.mxu0 0.0
        %491 = vmatpush1.msra.mxu0 0.0
        %492 = vmatprep.subr.mxu0 0.0
        %493 = vmatpush1.msra.mxu0 0.0
        %494 = vmatprep.subr.mxu0 0.0
        %495 = vmatpush1.msra.mxu0 0.0
        %496 = vmatprep.subr.mxu0 0.0
        %497 = vmatpush1.msra.mxu0 0.0
        %498 = vmatprep.subr.mxu0 0.0
        %499 = vmatpush1.msra.mxu0 0.0
        %500 = vmatprep.mubr.f32.mxu0 0.0
        %501 = vmatmul.mubr.f32.gmra.mrb[0].mxu0 %v425
        %v502 = vpop.f32.mrb[0].mxu0
        %v503 = vadd.f32 0.0, %v502
        %v504 = vpop.f32.mrb[0].mxu0
        %505 = vmatprep.mubr.f32.mxu0 0.0
        %506 = vmatmul.mubr.f32.gmra.mrb[0].mxu0 %v428
        %v507 = vpop.f32.mrb[0].mxu0
        %v508 = vadd.f32 0.0, %v507
        %v509 = vpop.f32.mrb[0].mxu0
        %510 = vmatprep.mubr.f32.mxu0 0.0
        %511 = vmatmul.mubr.f32.gmra.mrb[0].mxu0 %v431
        %v512 = vpop.f32.mrb[0].mxu0
        %v513 = vadd.f32 0.0, %v512
        %v514 = vpop.f32.mrb[0].mxu0
        %515 = vdwg.mxu0
        %v516 = vadd.f32 %v394, %v503
        %v517 = vadd.f32 %v399, %v508
        %v518 = vadd.f32 %v404, %v513
        %v519 = vld [vmem:[#allocation2] sm:$0xff]
        %v520 = vsel %vm186, 1, 0
        %vm521 = vcmp.eq.s32.totalorder %v520, 1
        %v523 = vcombine.high %v519, %v519
        %524 = vrot.lane.b32.xlu0 %v519, 125
        %v525 = vpop.permute.xlu0 %524
        %526 = vrot.lane.b32.xlu0 %v523, 125
        %v527 = vpop.permute.xlu0 %526
        %vm528 = vcmask 1022976
        %v529 = vsel %vm528, %v525, %v527
        %v531 = vsel %vm521, %v529, 0.0
        %s532 = scalar_lea.vmem %s1, 72
        %v533 = vld [vmem:[%s532] sm:$0xff]
        %v534 = vld [vmem:[%s532 + $0x8] sm:$0xff]
        %v535 = vld [vmem:[%s532 + $0x10] sm:$0xff]
        %v537 = vsel %vm222, %v533, 0
        %v540 = vsel %vm222, %v534, 0
        %v543 = vsel %vm222, %v535, 0
        %v546 = vsel %vm232, %v531, 0
        %548 = vmatprep.subr.mxu0 0.0
        %549 = vmatpush1.msra.mxu0 %v546
        %550 = vmatprep.subr.mxu0 0.0
        %551 = vmatpush1.msra.mxu0 0.0
        %552 = vmatprep.subr.mxu0 0.0
        %553 = vmatpush1.msra.mxu0 0.0
        %554 = vmatprep.subr.mxu0 0.0
        %555 = vmatpush1.msra.mxu0 0.0
        %556 = vmatprep.subr.mxu0 0.0
        %557 = vmatpush1.msra.mxu0 0.0
        %558 = vmatprep.subr.mxu0 0.0
        %559 = vmatpush1.msra.mxu0 0.0
        %560 = vmatprep.subr.mxu0 0.0
        %561 = vmatpush1.msra.mxu0 0.0
        %562 = vmatprep.subr.mxu0 0.0
        %563 = vmatpush1.msra.mxu0 0.0
        %564 = vmatprep.subr.mxu0 0.0
        %565 = vmatpush1.msra.mxu0 0.0
        %566 = vmatprep.subr.mxu0 0.0
        %567 = vmatpush1.msra.mxu0 0.0
        %568 = vmatprep.subr.mxu0 0.0
        %569 = vmatpush1.msra.mxu0 0.0
        %570 = vmatprep.subr.mxu0 0.0
        %571 = vmatpush1.msra.mxu0 0.0
        %572 = vmatprep.subr.mxu0 0.0
        %573 = vmatpush1.msra.mxu0 0.0
        %574 = vmatprep.subr.mxu0 0.0
        %575 = vmatpush1.msra.mxu0 0.0
        %576 = vmatprep.subr.mxu0 0.0
        %577 = vmatpush1.msra.mxu0 0.0
        %578 = vmatprep.subr.mxu0 0.0
        %579 = vmatpush1.msra.mxu0 0.0
        %580 = vmatprep.subr.mxu0 0.0
        %581 = vmatpush1.msra.mxu0 0.0
        %582 = vmatprep.subr.mxu0 0.0
        %583 = vmatpush1.msra.mxu0 0.0
        %584 = vmatprep.subr.mxu0 0.0
        %585 = vmatpush1.msra.mxu0 0.0
        %586 = vmatprep.subr.mxu0 0.0
        %587 = vmatpush1.msra.mxu0 0.0
        %588 = vmatprep.subr.mxu0 0.0
        %589 = vmatpush1.msra.mxu0 0.0
        %590 = vmatprep.subr.mxu0 0.0
        %591 = vmatpush1.msra.mxu0 0.0
        %592 = vmatprep.subr.mxu0 0.0
        %593 = vmatpush1.msra.mxu0 0.0
        %594 = vmatprep.subr.mxu0 0.0
        %595 = vmatpush1.msra.mxu0 0.0
        %596 = vmatprep.subr.mxu0 0.0
        %597 = vmatpush1.msra.mxu0 0.0
        %598 = vmatprep.subr.mxu0 0.0
        %599 = vmatpush1.msra.mxu0 0.0
        %600 = vmatprep.subr.mxu0 0.0
        %601 = vmatpush1.msra.mxu0 0.0
        %602 = vmatprep.subr.mxu0 0.0
        %603 = vmatpush1.msra.mxu0 0.0
        %604 = vmatprep.subr.mxu0 0.0
        %605 = vmatpush1.msra.mxu0 0.0
        %606 = vmatprep.subr.mxu0 0.0
        %607 = vmatpush1.msra.mxu0 0.0
        %608 = vmatprep.subr.mxu0 0.0
        %609 = vmatpush1.msra.mxu0 0.0
        %610 = vmatprep.subr.mxu0 0.0
        %611 = vmatpush1.msra.mxu0 0.0
        %612 = vmatprep.mubr.f32.mxu0 0.0
        %613 = vmatmul.mubr.f32.gmra.mrb[0].mxu0 %v537
        %v614 = vpop.f32.mrb[0].mxu0
        %v615 = vadd.f32 0.0, %v614
        %v616 = vpop.f32.mrb[0].mxu0
        %617 = vmatprep.mubr.f32.mxu0 0.0
        %618 = vmatmul.mubr.f32.gmra.mrb[0].mxu0 %v540
        %v619 = vpop.f32.mrb[0].mxu0
        %v620 = vadd.f32 0.0, %v619
        %v621 = vpop.f32.mrb[0].mxu0
        %622 = vmatprep.mubr.f32.mxu0 0.0
        %623 = vmatmul.mubr.f32.gmra.mrb[0].mxu0 %v543
        %v624 = vpop.f32.mrb[0].mxu0
        %v625 = vadd.f32 0.0, %v624
        %v626 = vpop.f32.mrb[0].mxu0
        %627 = vdwg.mxu0
        %v628 = vadd.f32 %v516, %v615
        %v629 = vadd.f32 %v517, %v620
        %v630 = vadd.f32 %v518, %v625
        %v631 = vld [vmem:[#allocation2] sm:$0xff]
        %v633 = vcombine.high %v631, %v631
        %634 = vrot.lane.b32.xlu0 %v631, 112
        %v635 = vpop.permute.xlu0 %634
        %636 = vrot.lane.b32.xlu0 %v633, 112
        %v637 = vpop.permute.xlu0 %636
        %vm638 = vcmask 916480
        %v639 = vsel %vm638, %v635, %v637
        %v641 = vsel %vm204, %v639, 0.0
        %s642 = scalar_lea.vmem %s1, 96
        %v643 = vld [vmem:[%s642] sm:$0xff]
        %v644 = vld [vmem:[%s642 + $0x8] sm:$0xff]
        %v645 = vld [vmem:[%s642 + $0x10] sm:$0xff]
        %v647 = vsel %vm222, %v643, 0
        %v650 = vsel %vm222, %v644, 0
        %v653 = vsel %vm222, %v645, 0
        %v656 = vsel %vm232, %v641, 0
        %658 = vmatprep.subr.mxu0 0.0
        %659 = vmatpush1.msra.mxu0 %v656
        %660 = vmatprep.subr.mxu0 0.0
        %661 = vmatpush1.msra.mxu0 0.0
        %662 = vmatprep.subr.mxu0 0.0
        %663 = vmatpush1.msra.mxu0 0.0
        %664 = vmatprep.subr.mxu0 0.0
        %665 = vmatpush1.msra.mxu0 0.0
        %666 = vmatprep.subr.mxu0 0.0
        %667 = vmatpush1.msra.mxu0 0.0
        %668 = vmatprep.subr.mxu0 0.0
        %669 = vmatpush1.msra.mxu0 0.0
        %670 = vmatprep.subr.mxu0 0.0
        %671 = vmatpush1.msra.mxu0 0.0
        %672 = vmatprep.subr.mxu0 0.0
        %673 = vmatpush1.msra.mxu0 0.0
        %674 = vmatprep.subr.mxu0 0.0
        %675 = vmatpush1.msra.mxu0 0.0
        %676 = vmatprep.subr.mxu0 0.0
        %677 = vmatpush1.msra.mxu0 0.0
        %678 = vmatprep.subr.mxu0 0.0
        %679 = vmatpush1.msra.mxu0 0.0
        %680 = vmatprep.subr.mxu0 0.0
        %681 = vmatpush1.msra.mxu0 0.0
        %682 = vmatprep.subr.mxu0 0.0
        %683 = vmatpush1.msra.mxu0 0.0
        %684 = vmatprep.subr.mxu0 0.0
        %685 = vmatpush1.msra.mxu0 0.0
        %686 = vmatprep.subr.mxu0 0.0
        %687 = vmatpush1.msra.mxu0 0.0
        %688 = vmatprep.subr.mxu0 0.0
        %689 = vmatpush1.msra.mxu0 0.0
        %690 = vmatprep.subr.mxu0 0.0
        %691 = vmatpush1.msra.mxu0 0.0
        %692 = vmatprep.subr.mxu0 0.0
        %693 = vmatpush1.msra.mxu0 0.0
        %694 = vmatprep.subr.mxu0 0.0
        %695 = vmatpush1.msra.mxu0 0.0
        %696 = vmatprep.subr.mxu0 0.0
        %697 = vmatpush1.msra.mxu0 0.0
        %698 = vmatprep.subr.mxu0 0.0
        %699 = vmatpush1.msra.mxu0 0.0
        %700 = vmatprep.subr.mxu0 0.0
        %701 = vmatpush1.msra.mxu0 0.0
        %702 = vmatprep.subr.mxu0 0.0
        %703 = vmatpush1.msra.mxu0 0.0
        %704 = vmatprep.subr.mxu0 0.0
        %705 = vmatpush1.msra.mxu0 0.0
        %706 = vmatprep.subr.mxu0 0.0
        %707 = vmatpush1.msra.mxu0 0.0
        %708 = vmatprep.subr.mxu0 0.0
        %709 = vmatpush1.msra.mxu0 0.0
        %710 = vmatprep.subr.mxu0 0.0
        %711 = vmatpush1.msra.mxu0 0.0
        %712 = vmatprep.subr.mxu0 0.0
        %713 = vmatpush1.msra.mxu0 0.0
        %714 = vmatprep.subr.mxu0 0.0
        %715 = vmatpush1.msra.mxu0 0.0
        %716 = vmatprep.subr.mxu0 0.0
        %717 = vmatpush1.msra.mxu0 0.0
        %718 = vmatprep.subr.mxu0 0.0
        %719 = vmatpush1.msra.mxu0 0.0
        %720 = vmatprep.subr.mxu0 0.0
        %721 = vmatpush1.msra.mxu0 0.0
        %722 = vmatprep.mubr.f32.mxu0 0.0
        %723 = vmatmul.mubr.f32.gmra.mrb[0].mxu0 %v647
        %v724 = vpop.f32.mrb[0].mxu0
        %v725 = vadd.f32 0.0, %v724
        %v726 = vpop.f32.mrb[0].mxu0
        %727 = vmatprep.mubr.f32.mxu0 0.0
        %728 = vmatmul.mubr.f32.gmra.mrb[0].mxu0 %v650
        %v729 = vpop.f32.mrb[0].mxu0
        %v730 = vadd.f32 0.0, %v729
        %v731 = vpop.f32.mrb[0].mxu0
        %732 = vmatprep.mubr.f32.mxu0 0.0
        %733 = vmatmul.mubr.f32.gmra.mrb[0].mxu0 %v653
        %v734 = vpop.f32.mrb[0].mxu0
        %v735 = vadd.f32 0.0, %v734
        %v736 = vpop.f32.mrb[0].mxu0
        %737 = vdwg.mxu0
        %v738 = vadd.f32 %v628, %v725
        %v739 = vadd.f32 %v629, %v730
        %v740 = vadd.f32 %v630, %v735
        %v741 = vld [vmem:[#allocation2] sm:$0xff]
        %s742 = scalar_lea.vmem %s1, 120
        %v743 = vld [vmem:[%s742] sm:$0xff]
        %v744 = vld [vmem:[%s742 + $0x8] sm:$0xff]
        %v745 = vld [vmem:[%s742 + $0x10] sm:$0xff]
        %v747 = vcombine.high %v741, %v741
        %748 = vrot.lane.b32.xlu0 %v741, 111
        %v749 = vpop.permute.xlu0 %748
        %750 = vrot.lane.b32.xlu0 %v747, 111
        %v751 = vpop.permute.xlu0 %750
        %vm752 = vcmask 908288
        %v753 = vsel %vm752, %v749, %v751
        %v755 = vsel %vm222, %v743, 0
        %v758 = vsel %vm222, %v744, 0
        %v761 = vsel %vm222, %v745, 0
        %v763 = vsel %vm232, %v753, 0
        %765 = vmatprep.subr.mxu0 0.0
        %766 = vmatpush1.msra.mxu0 %v763
        %767 = vmatprep.subr.mxu0 0.0
        %768 = vmatpush1.msra.mxu0 0.0
        %769 = vmatprep.subr.mxu0 0.0
        %770 = vmatpush1.msra.mxu0 0.0
        %771 = vmatprep.subr.mxu0 0.0
        %772 = vmatpush1.msra.mxu0 0.0
        %773 = vmatprep.subr.mxu0 0.0
        %774 = vmatpush1.msra.mxu0 0.0
        %775 = vmatprep.subr.mxu0 0.0
        %776 = vmatpush1.msra.mxu0 0.0
        %777 = vmatprep.subr.mxu0 0.0
        %778 = vmatpush1.msra.mxu0 0.0
        %779 = vmatprep.subr.mxu0 0.0
        %780 = vmatpush1.msra.mxu0 0.0
        %781 = vmatprep.subr.mxu0 0.0
        %782 = vmatpush1.msra.mxu0 0.0
        %783 = vmatprep.subr.mxu0 0.0
        %784 = vmatpush1.msra.mxu0 0.0
        %785 = vmatprep.subr.mxu0 0.0
        %786 = vmatpush1.msra.mxu0 0.0
        %787 = vmatprep.subr.mxu0 0.0
        %788 = vmatpush1.msra.mxu0 0.0
        %789 = vmatprep.subr.mxu0 0.0
        %790 = vmatpush1.msra.mxu0 0.0
        %791 = vmatprep.subr.mxu0 0.0
        %792 = vmatpush1.msra.mxu0 0.0
        %793 = vmatprep.subr.mxu0 0.0
        %794 = vmatpush1.msra.mxu0 0.0
        %795 = vmatprep.subr.mxu0 0.0
        %796 = vmatpush1.msra.mxu0 0.0
        %797 = vmatprep.subr.mxu0 0.0
        %798 = vmatpush1.msra.mxu0 0.0
        %799 = vmatprep.subr.mxu0 0.0
        %800 = vmatpush1.msra.mxu0 0.0
        %801 = vmatprep.subr.mxu0 0.0
        %802 = vmatpush1.msra.mxu0 0.0
        %803 = vmatprep.subr.mxu0 0.0
        %804 = vmatpush1.msra.mxu0 0.0
        %805 = vmatprep.subr.mxu0 0.0
        %806 = vmatpush1.msra.mxu0 0.0
        %807 = vmatprep.subr.mxu0 0.0
        %808 = vmatpush1.msra.mxu0 0.0
        %809 = vmatprep.subr.mxu0 0.0
        %810 = vmatpush1.msra.mxu0 0.0
        %811 = vmatprep.subr.mxu0 0.0
        %812 = vmatpush1.msra.mxu0 0.0
        %813 = vmatprep.subr.mxu0 0.0
        %814 = vmatpush1.msra.mxu0 0.0
        %815 = vmatprep.subr.mxu0 0.0
        %816 = vmatpush1.msra.mxu0 0.0
        %817 = vmatprep.subr.mxu0 0.0
        %818 = vmatpush1.msra.mxu0 0.0
        %819 = vmatprep.subr.mxu0 0.0
        %820 = vmatpush1.msra.mxu0 0.0
        %821 = vmatprep.subr.mxu0 0.0
        %822 = vmatpush1.msra.mxu0 0.0
        %823 = vmatprep.subr.mxu0 0.0
        %824 = vmatpush1.msra.mxu0 0.0
        %825 = vmatprep.subr.mxu0 0.0
        %826 = vmatpush1.msra.mxu0 0.0
        %827 = vmatprep.subr.mxu0 0.0
        %828 = vmatpush1.msra.mxu0 0.0
        %829 = vmatprep.mubr.f32.mxu0 0.0
        %830 = vmatmul.mubr.f32.gmra.mrb[0].mxu0 %v755
        %v831 = vpop.f32.mrb[0].mxu0
        %v832 = vadd.f32 0.0, %v831
        %v833 = vpop.f32.mrb[0].mxu0
        %834 = vmatprep.mubr.f32.mxu0 0.0
        %835 = vmatmul.mubr.f32.gmra.mrb[0].mxu0 %v758
        %v836 = vpop.f32.mrb[0].mxu0
        %v837 = vadd.f32 0.0, %v836
        %v838 = vpop.f32.mrb[0].mxu0
        %839 = vmatprep.mubr.f32.mxu0 0.0
        %840 = vmatmul.mubr.f32.gmra.mrb[0].mxu0 %v761
        %v841 = vpop.f32.mrb[0].mxu0
        %v842 = vadd.f32 0.0, %v841
        %v843 = vpop.f32.mrb[0].mxu0
        %844 = vdwg.mxu0
        %v845 = vadd.f32 %v738, %v832
        %v846 = vadd.f32 %v739, %v837
        %v847 = vadd.f32 %v740, %v842
        %v848 = vld [vmem:[#allocation2] sm:$0xff]
        %v850 = vcombine.high %v848, %v848
        %851 = vrot.lane.b32.xlu0 %v848, 110
        %v852 = vpop.permute.xlu0 %851
        %853 = vrot.lane.b32.xlu0 %v850, 110
        %v854 = vpop.permute.xlu0 %853
        %vm855 = vcmask 900096
        %v856 = vsel %vm855, %v852, %v854
        %v858 = vsel %vm409, %v856, 0.0
        %s859 = scalar_lea.vmem %s1, 144
        %v860 = vld [vmem:[%s859] sm:$0xff]
        %v861 = vld [vmem:[%s859 + $0x8] sm:$0xff]
        %v862 = vld [vmem:[%s859 + $0x10] sm:$0xff]
        %v864 = vsel %vm222, %v860, 0
        %v867 = vsel %vm222, %v861, 0
        %v870 = vsel %vm222, %v862, 0
        %v873 = vsel %vm232, %v858, 0
        %875 = vmatprep.subr.mxu0 0.0
        %876 = vmatpush1.msra.mxu0 %v873
        %877 = vmatprep.subr.mxu0 0.0
        %878 = vmatpush1.msra.mxu0 0.0
        %879 = vmatprep.subr.mxu0 0.0
        %880 = vmatpush1.msra.mxu0 0.0
        %881 = vmatprep.subr.mxu0 0.0
        %882 = vmatpush1.msra.mxu0 0.0
        %883 = vmatprep.subr.mxu0 0.0
        %884 = vmatpush1.msra.mxu0 0.0
        %885 = vmatprep.subr.mxu0 0.0
        %886 = vmatpush1.msra.mxu0 0.0
        %887 = vmatprep.subr.mxu0 0.0
        %888 = vmatpush1.msra.mxu0 0.0
        %889 = vmatprep.subr.mxu0 0.0
        %890 = vmatpush1.msra.mxu0 0.0
        %891 = vmatprep.subr.mxu0 0.0
        %892 = vmatpush1.msra.mxu0 0.0
        %893 = vmatprep.subr.mxu0 0.0
        %894 = vmatpush1.msra.mxu0 0.0
        %895 = vmatprep.subr.mxu0 0.0
        %896 = vmatpush1.msra.mxu0 0.0
        %897 = vmatprep.subr.mxu0 0.0
        %898 = vmatpush1.msra.mxu0 0.0
        %899 = vmatprep.subr.mxu0 0.0
        %900 = vmatpush1.msra.mxu0 0.0
        %901 = vmatprep.subr.mxu0 0.0
        %902 = vmatpush1.msra.mxu0 0.0
        %903 = vmatprep.subr.mxu0 0.0
        %904 = vmatpush1.msra.mxu0 0.0
        %905 = vmatprep.subr.mxu0 0.0
        %906 = vmatpush1.msra.mxu0 0.0
        %907 = vmatprep.subr.mxu0 0.0
        %908 = vmatpush1.msra.mxu0 0.0
        %909 = vmatprep.subr.mxu0 0.0
        %910 = vmatpush1.msra.mxu0 0.0
        %911 = vmatprep.subr.mxu0 0.0
        %912 = vmatpush1.msra.mxu0 0.0
        %913 = vmatprep.subr.mxu0 0.0
        %914 = vmatpush1.msra.mxu0 0.0
        %915 = vmatprep.subr.mxu0 0.0
        %916 = vmatpush1.msra.mxu0 0.0
        %917 = vmatprep.subr.mxu0 0.0
        %918 = vmatpush1.msra.mxu0 0.0
        %919 = vmatprep.subr.mxu0 0.0
        %920 = vmatpush1.msra.mxu0 0.0
        %921 = vmatprep.subr.mxu0 0.0
        %922 = vmatpush1.msra.mxu0 0.0
        %923 = vmatprep.subr.mxu0 0.0
        %924 = vmatpush1.msra.mxu0 0.0
        %925 = vmatprep.subr.mxu0 0.0
        %926 = vmatpush1.msra.mxu0 0.0
        %927 = vmatprep.subr.mxu0 0.0
        %928 = vmatpush1.msra.mxu0 0.0
        %929 = vmatprep.subr.mxu0 0.0
        %930 = vmatpush1.msra.mxu0 0.0
        %931 = vmatprep.subr.mxu0 0.0
        %932 = vmatpush1.msra.mxu0 0.0
        %933 = vmatprep.subr.mxu0 0.0
        %934 = vmatpush1.msra.mxu0 0.0
        %935 = vmatprep.subr.mxu0 0.0
        %936 = vmatpush1.msra.mxu0 0.0
        %937 = vmatprep.subr.mxu0 0.0
        %938 = vmatpush1.msra.mxu0 0.0
        %939 = vmatprep.mubr.f32.mxu0 0.0
        %940 = vmatmul.mubr.f32.gmra.mrb[0].mxu0 %v864
        %v941 = vpop.f32.mrb[0].mxu0
        %v942 = vadd.f32 0.0, %v941
        %v943 = vpop.f32.mrb[0].mxu0
        %944 = vmatprep.mubr.f32.mxu0 0.0
        %945 = vmatmul.mubr.f32.gmra.mrb[0].mxu0 %v867
        %v946 = vpop.f32.mrb[0].mxu0
        %v947 = vadd.f32 0.0, %v946
        %v948 = vpop.f32.mrb[0].mxu0
        %949 = vmatprep.mubr.f32.mxu0 0.0
        %950 = vmatmul.mubr.f32.gmra.mrb[0].mxu0 %v870
        %v951 = vpop.f32.mrb[0].mxu0
        %v952 = vadd.f32 0.0, %v951
        %v953 = vpop.f32.mrb[0].mxu0
        %954 = vdwg.mxu0
        %v955 = vadd.f32 %v845, %v942
        %v956 = vadd.f32 %v846, %v947
        %v957 = vadd.f32 %v847, %v952
        %v958 = vld [vmem:[#allocation2] sm:$0xff]
        %v960 = vcombine.high %v958, %v958
        %961 = vrot.lane.b32.xlu0 %v958, 109
        %v962 = vpop.permute.xlu0 %961
        %963 = vrot.lane.b32.xlu0 %v960, 109
        %v964 = vpop.permute.xlu0 %963
        %vm965 = vcmask 891904
        %v966 = vsel %vm965, %v962, %v964
        %v968 = vsel %vm521, %v966, 0.0
        %s969 = scalar_lea.vmem %s1, 168
        %v970 = vld [vmem:[%s969] sm:$0xff]
        %v971 = vld [vmem:[%s969 + $0x8] sm:$0xff]
        %v972 = vld [vmem:[%s969 + $0x10] sm:$0xff]
        %v974 = vsel %vm222, %v970, 0
        %v977 = vsel %vm222, %v971, 0
        %v980 = vsel %vm222, %v972, 0
        %v983 = vsel %vm232, %v968, 0
        %985 = vmatprep.subr.mxu0 0.0
        %986 = vmatpush1.msra.mxu0 %v983
        %987 = vmatprep.subr.mxu0 0.0
        %988 = vmatpush1.msra.mxu0 0.0
        %989 = vmatprep.subr.mxu0 0.0
        %990 = vmatpush1.msra.mxu0 0.0
        %991 = vmatprep.subr.mxu0 0.0
        %992 = vmatpush1.msra.mxu0 0.0
        %993 = vmatprep.subr.mxu0 0.0
        %994 = vmatpush1.msra.mxu0 0.0
        %995 = vmatprep.subr.mxu0 0.0
        %996 = vmatpush1.msra.mxu0 0.0
        %997 = vmatprep.subr.mxu0 0.0
        %998 = vmatpush1.msra.mxu0 0.0
        %999 = vmatprep.subr.mxu0 0.0
        %1000 = vmatpush1.msra.mxu0 0.0
        %1001 = vmatprep.subr.mxu0 0.0
        %1002 = vmatpush1.msra.mxu0 0.0
        %1003 = vmatprep.subr.mxu0 0.0
        %1004 = vmatpush1.msra.mxu0 0.0
        %1005 = vmatprep.subr.mxu0 0.0
        %1006 = vmatpush1.msra.mxu0 0.0
        %1007 = vmatprep.subr.mxu0 0.0
        %1008 = vmatpush1.msra.mxu0 0.0
        %1009 = vmatprep.subr.mxu0 0.0
        %1010 = vmatpush1.msra.mxu0 0.0
        %1011 = vmatprep.subr.mxu0 0.0
        %1012 = vmatpush1.msra.mxu0 0.0
        %1013 = vmatprep.subr.mxu0 0.0
        %1014 = vmatpush1.msra.mxu0 0.0
        %1015 = vmatprep.subr.mxu0 0.0
        %1016 = vmatpush1.msra.mxu0 0.0
        %1017 = vmatprep.subr.mxu0 0.0
        %1018 = vmatpush1.msra.mxu0 0.0
        %1019 = vmatprep.subr.mxu0 0.0
        %1020 = vmatpush1.msra.mxu0 0.0
        %1021 = vmatprep.subr.mxu0 0.0
        %1022 = vmatpush1.msra.mxu0 0.0
        %1023 = vmatprep.subr.mxu0 0.0
        %1024 = vmatpush1.msra.mxu0 0.0
        %1025 = vmatprep.subr.mxu0 0.0
        %1026 = vmatpush1.msra.mxu0 0.0
        %1027 = vmatprep.subr.mxu0 0.0
        %1028 = vmatpush1.msra.mxu0 0.0
        %1029 = vmatprep.subr.mxu0 0.0
        %1030 = vmatpush1.msra.mxu0 0.0
        %1031 = vmatprep.subr.mxu0 0.0
        %1032 = vmatpush1.msra.mxu0 0.0
        %1033 = vmatprep.subr.mxu0 0.0
        %1034 = vmatpush1.msra.mxu0 0.0
        %1035 = vmatprep.subr.mxu0 0.0
        %1036 = vmatpush1.msra.mxu0 0.0
        %1037 = vmatprep.subr.mxu0 0.0
        %1038 = vmatpush1.msra.mxu0 0.0
        %1039 = vmatprep.subr.mxu0 0.0
        %1040 = vmatpush1.msra.mxu0 0.0
        %1041 = vmatprep.subr.mxu0 0.0
        %1042 = vmatpush1.msra.mxu0 0.0
        %1043 = vmatprep.subr.mxu0 0.0
        %1044 = vmatpush1.msra.mxu0 0.0
        %1045 = vmatprep.subr.mxu0 0.0
        %1046 = vmatpush1.msra.mxu0 0.0
        %1047 = vmatprep.subr.mxu0 0.0
        %1048 = vmatpush1.msra.mxu0 0.0
        %1049 = vmatprep.mubr.f32.mxu0 0.0
        %1050 = vmatmul.mubr.f32.gmra.mrb[0].mxu0 %v974
        %v1051 = vpop.f32.mrb[0].mxu0
        %v1052 = vadd.f32 0.0, %v1051
        %v1053 = vpop.f32.mrb[0].mxu0
        %1054 = vmatprep.mubr.f32.mxu0 0.0
        %1055 = vmatmul.mubr.f32.gmra.mrb[0].mxu0 %v977
        %v1056 = vpop.f32.mrb[0].mxu0
        %v1057 = vadd.f32 0.0, %v1056
        %v1058 = vpop.f32.mrb[0].mxu0
        %1059 = vmatprep.mubr.f32.mxu0 0.0
        %1060 = vmatmul.mubr.f32.gmra.mrb[0].mxu0 %v980
        %v1061 = vpop.f32.mrb[0].mxu0
        %v1062 = vadd.f32 0.0, %v1061
        %v1063 = vpop.f32.mrb[0].mxu0
        %1064 = vdwg.mxu0
        %v1065 = vadd.f32 %v955, %v1052
        %v1066 = vadd.f32 %v956, %v1057
        %v1067 = vadd.f32 %v957, %v1062
        %v1068 = vld [vmem:[#allocation2] sm:$0xff]
        %v1070 = vcombine.high %v1068, %v1068
        %1071 = vrot.lane.b32.xlu0 %v1068, 96
        %v1072 = vpop.permute.xlu0 %1071
        %1073 = vrot.lane.b32.xlu0 %v1070, 96
        %v1074 = vpop.permute.xlu0 %1073
        %vm1075 = vcmask 785408
        %v1076 = vsel %vm1075, %v1072, %v1074
        %v1078 = vsel %vm204, %v1076, 0.0
        %s1079 = scalar_lea.vmem %s1, 192
        %v1080 = vld [vmem:[%s1079] sm:$0xff]
        %v1081 = vld [vmem:[%s1079 + $0x8] sm:$0xff]
        %v1082 = vld [vmem:[%s1079 + $0x10] sm:$0xff]
        %v1084 = vsel %vm222, %v1080, 0
        %v1087 = vsel %vm222, %v1081, 0
        %v1090 = vsel %vm222, %v1082, 0
        %v1093 = vsel %vm232, %v1078, 0
        %1095 = vmatprep.subr.mxu0 0.0
        %1096 = vmatpush1.msra.mxu0 %v1093
        %1097 = vmatprep.subr.mxu0 0.0
        %1098 = vmatpush1.msra.mxu0 0.0
        %1099 = vmatprep.subr.mxu0 0.0
        %1100 = vmatpush1.msra.mxu0 0.0
        %1101 = vmatprep.subr.mxu0 0.0
        %1102 = vmatpush1.msra.mxu0 0.0
        %1103 = vmatprep.subr.mxu0 0.0
        %1104 = vmatpush1.msra.mxu0 0.0
        %1105 = vmatprep.subr.mxu0 0.0
        %1106 = vmatpush1.msra.mxu0 0.0
        %1107 = vmatprep.subr.mxu0 0.0
        %1108 = vmatpush1.msra.mxu0 0.0
        %1109 = vmatprep.subr.mxu0 0.0
        %1110 = vmatpush1.msra.mxu0 0.0
        %1111 = vmatprep.subr.mxu0 0.0
        %1112 = vmatpush1.msra.mxu0 0.0
        %1113 = vmatprep.subr.mxu0 0.0
        %1114 = vmatpush1.msra.mxu0 0.0
        %1115 = vmatprep.subr.mxu0 0.0
        %1116 = vmatpush1.msra.mxu0 0.0
        %1117 = vmatprep.subr.mxu0 0.0
        %1118 = vmatpush1.msra.mxu0 0.0
        %1119 = vmatprep.subr.mxu0 0.0
        %1120 = vmatpush1.msra.mxu0 0.0
        %1121 = vmatprep.subr.mxu0 0.0
        %1122 = vmatpush1.msra.mxu0 0.0
        %1123 = vmatprep.subr.mxu0 0.0
        %1124 = vmatpush1.msra.mxu0 0.0
        %1125 = vmatprep.subr.mxu0 0.0
        %1126 = vmatpush1.msra.mxu0 0.0
        %1127 = vmatprep.subr.mxu0 0.0
        %1128 = vmatpush1.msra.mxu0 0.0
        %1129 = vmatprep.subr.mxu0 0.0
        %1130 = vmatpush1.msra.mxu0 0.0
        %1131 = vmatprep.subr.mxu0 0.0
        %1132 = vmatpush1.msra.mxu0 0.0
        %1133 = vmatprep.subr.mxu0 0.0
        %1134 = vmatpush1.msra.mxu0 0.0
        %1135 = vmatprep.subr.mxu0 0.0
        %1136 = vmatpush1.msra.mxu0 0.0
        %1137 = vmatprep.subr.mxu0 0.0
        %1138 = vmatpush1.msra.mxu0 0.0
        %1139 = vmatprep.subr.mxu0 0.0
        %1140 = vmatpush1.msra.mxu0 0.0
        %1141 = vmatprep.subr.mxu0 0.0
        %1142 = vmatpush1.msra.mxu0 0.0
        %1143 = vmatprep.subr.mxu0 0.0
        %1144 = vmatpush1.msra.mxu0 0.0
        %1145 = vmatprep.subr.mxu0 0.0
        %1146 = vmatpush1.msra.mxu0 0.0
        %1147 = vmatprep.subr.mxu0 0.0
        %1148 = vmatpush1.msra.mxu0 0.0
        %1149 = vmatprep.subr.mxu0 0.0
        %1150 = vmatpush1.msra.mxu0 0.0
        %1151 = vmatprep.subr.mxu0 0.0
        %1152 = vmatpush1.msra.mxu0 0.0
        %1153 = vmatprep.subr.mxu0 0.0
        %1154 = vmatpush1.msra.mxu0 0.0
        %1155 = vmatprep.subr.mxu0 0.0
        %1156 = vmatpush1.msra.mxu0 0.0
        %1157 = vmatprep.subr.mxu0 0.0
        %1158 = vmatpush1.msra.mxu0 0.0
        %1159 = vmatprep.mubr.f32.mxu0 0.0
        %1160 = vmatmul.mubr.f32.gmra.mrb[0].mxu0 %v1084
        %v1161 = vpop.f32.mrb[0].mxu0
        %v1162 = vadd.f32 0.0, %v1161
        %v1163 = vpop.f32.mrb[0].mxu0
        %1164 = vmatprep.mubr.f32.mxu0 0.0
        %1165 = vmatmul.mubr.f32.gmra.mrb[0].mxu0 %v1087
        %v1166 = vpop.f32.mrb[0].mxu0
        %v1167 = vadd.f32 0.0, %v1166
        %v1168 = vpop.f32.mrb[0].mxu0
        %1169 = vmatprep.mubr.f32.mxu0 0.0
        %1170 = vmatmul.mubr.f32.gmra.mrb[0].mxu0 %v1090
        %v1171 = vpop.f32.mrb[0].mxu0
        %v1172 = vadd.f32 0.0, %v1171
        %v1173 = vpop.f32.mrb[0].mxu0
        %1174 = vdwg.mxu0
        %v1175 = vadd.f32 %v1065, %v1162
        %v1176 = vadd.f32 %v1066, %v1167
        %v1177 = vadd.f32 %v1067, %v1172
        %v1178 = vld [vmem:[#allocation2] sm:$0xff]
        %s1179 = scalar_lea.vmem %s1, 216
        %v1180 = vld [vmem:[%s1179] sm:$0xff]
        %v1181 = vld [vmem:[%s1179 + $0x8] sm:$0xff]
        %v1182 = vld [vmem:[%s1179 + $0x10] sm:$0xff]
        %v1184 = vcombine.high %v1178, %v1178
        %1185 = vrot.lane.b32.xlu0 %v1178, 95
        %v1186 = vpop.permute.xlu0 %1185
        %1187 = vrot.lane.b32.xlu0 %v1184, 95
        %v1188 = vpop.permute.xlu0 %1187
        %vm1189 = vcmask 777216
        %v1190 = vsel %vm1189, %v1186, %v1188
        %v1192 = vsel %vm222, %v1180, 0
        %v1195 = vsel %vm222, %v1181, 0
        %v1198 = vsel %vm222, %v1182, 0
        %v1200 = vsel %vm232, %v1190, 0
        %1202 = vmatprep.subr.mxu0 0.0
        %1203 = vmatpush1.msra.mxu0 %v1200
        %1204 = vmatprep.subr.mxu0 0.0
        %1205 = vmatpush1.msra.mxu0 0.0
        %1206 = vmatprep.subr.mxu0 0.0
        %1207 = vmatpush1.msra.mxu0 0.0
        %1208 = vmatprep.subr.mxu0 0.0
        %1209 = vmatpush1.msra.mxu0 0.0
        %1210 = vmatprep.subr.mxu0 0.0
        %1211 = vmatpush1.msra.mxu0 0.0
        %1212 = vmatprep.subr.mxu0 0.0
        %1213 = vmatpush1.msra.mxu0 0.0
        %1214 = vmatprep.subr.mxu0 0.0
        %1215 = vmatpush1.msra.mxu0 0.0
        %1216 = vmatprep.subr.mxu0 0.0
        %1217 = vmatpush1.msra.mxu0 0.0
        %1218 = vmatprep.subr.mxu0 0.0
        %1219 = vmatpush1.msra.mxu0 0.0
        %1220 = vmatprep.subr.mxu0 0.0
        %1221 = vmatpush1.msra.mxu0 0.0
        %1222 = vmatprep.subr.mxu0 0.0
        %1223 = vmatpush1.msra.mxu0 0.0
        %1224 = vmatprep.subr.mxu0 0.0
        %1225 = vmatpush1.msra.mxu0 0.0
        %1226 = vmatprep.subr.mxu0 0.0
        %1227 = vmatpush1.msra.mxu0 0.0
        %1228 = vmatprep.subr.mxu0 0.0
        %1229 = vmatpush1.msra.mxu0 0.0
        %1230 = vmatprep.subr.mxu0 0.0
        %1231 = vmatpush1.msra.mxu0 0.0
        %1232 = vmatprep.subr.mxu0 0.0
        %1233 = vmatpush1.msra.mxu0 0.0
        %1234 = vmatprep.subr.mxu0 0.0
        %1235 = vmatpush1.msra.mxu0 0.0
        %1236 = vmatprep.subr.mxu0 0.0
        %1237 = vmatpush1.msra.mxu0 0.0
        %1238 = vmatprep.subr.mxu0 0.0
        %1239 = vmatpush1.msra.mxu0 0.0
        %1240 = vmatprep.subr.mxu0 0.0
        %1241 = vmatpush1.msra.mxu0 0.0
        %1242 = vmatprep.subr.mxu0 0.0
        %1243 = vmatpush1.msra.mxu0 0.0
        %1244 = vmatprep.subr.mxu0 0.0
        %1245 = vmatpush1.msra.mxu0 0.0
        %1246 = vmatprep.subr.mxu0 0.0
        %1247 = vmatpush1.msra.mxu0 0.0
        %1248 = vmatprep.subr.mxu0 0.0
        %1249 = vmatpush1.msra.mxu0 0.0
        %1250 = vmatprep.subr.mxu0 0.0
        %1251 = vmatpush1.msra.mxu0 0.0
        %1252 = vmatprep.subr.mxu0 0.0
        %1253 = vmatpush1.msra.mxu0 0.0
        %1254 = vmatprep.subr.mxu0 0.0
        %1255 = vmatpush1.msra.mxu0 0.0
        %1256 = vmatprep.subr.mxu0 0.0
        %1257 = vmatpush1.msra.mxu0 0.0
        %1258 = vmatprep.subr.mxu0 0.0
        %1259 = vmatpush1.msra.mxu0 0.0
        %1260 = vmatprep.subr.mxu0 0.0
        %1261 = vmatpush1.msra.mxu0 0.0
        %1262 = vmatprep.subr.mxu0 0.0
        %1263 = vmatpush1.msra.mxu0 0.0
        %1264 = vmatprep.subr.mxu0 0.0
        %1265 = vmatpush1.msra.mxu0 0.0
        %1266 = vmatprep.mubr.f32.mxu0 0.0
        %1267 = vmatmul.mubr.f32.gmra.mrb[0].mxu0 %v1192
        %v1268 = vpop.f32.mrb[0].mxu0
        %v1269 = vadd.f32 0.0, %v1268
        %v1270 = vpop.f32.mrb[0].mxu0
        %1271 = vmatprep.mubr.f32.mxu0 0.0
        %1272 = vmatmul.mubr.f32.gmra.mrb[0].mxu0 %v1195
        %v1273 = vpop.f32.mrb[0].mxu0
        %v1274 = vadd.f32 0.0, %v1273
        %v1275 = vpop.f32.mrb[0].mxu0
        %1276 = vmatprep.mubr.f32.mxu0 0.0
        %1277 = vmatmul.mubr.f32.gmra.mrb[0].mxu0 %v1198
        %v1278 = vpop.f32.mrb[0].mxu0
        %v1279 = vadd.f32 0.0, %v1278
        %v1280 = vpop.f32.mrb[0].mxu0
        %1281 = vdwg.mxu0
        %v1282 = vadd.f32 %v1175, %v1269
        %v1283 = vadd.f32 %v1176, %v1274
        %v1284 = vadd.f32 %v1177, %v1279
        %v1285 = vld [vmem:[#allocation2] sm:$0xff]
        %v1287 = vcombine.high %v1285, %v1285
        %1288 = vrot.lane.b32.xlu0 %v1285, 94
        %v1289 = vpop.permute.xlu0 %1288
        %1290 = vrot.lane.b32.xlu0 %v1287, 94
        %v1291 = vpop.permute.xlu0 %1290
        %vm1292 = vcmask 769024
        %v1293 = vsel %vm1292, %v1289, %v1291
        %v1295 = vsel %vm409, %v1293, 0.0
        %s1296 = scalar_lea.vmem %s1, 240
        %v1297 = vld [vmem:[%s1296] sm:$0xff]
        %v1298 = vld [vmem:[%s1296 + $0x8] sm:$0xff]
        %v1299 = vld [vmem:[%s1296 + $0x10] sm:$0xff]
        %v1301 = vsel %vm222, %v1297, 0
        %v1304 = vsel %vm222, %v1298, 0
        %v1307 = vsel %vm222, %v1299, 0
        %v1310 = vsel %vm232, %v1295, 0
        %1312 = vmatprep.subr.mxu0 0.0
        %1313 = vmatpush1.msra.mxu0 %v1310
        %1314 = vmatprep.subr.mxu0 0.0
        %1315 = vmatpush1.msra.mxu0 0.0
        %1316 = vmatprep.subr.mxu0 0.0
        %1317 = vmatpush1.msra.mxu0 0.0
        %1318 = vmatprep.subr.mxu0 0.0
        %1319 = vmatpush1.msra.mxu0 0.0
        %1320 = vmatprep.subr.mxu0 0.0
        %1321 = vmatpush1.msra.mxu0 0.0
        %1322 = vmatprep.subr.mxu0 0.0
        %1323 = vmatpush1.msra.mxu0 0.0
        %1324 = vmatprep.subr.mxu0 0.0
        %1325 = vmatpush1.msra.mxu0 0.0
        %1326 = vmatprep.subr.mxu0 0.0
        %1327 = vmatpush1.msra.mxu0 0.0
        %1328 = vmatprep.subr.mxu0 0.0
        %1329 = vmatpush1.msra.mxu0 0.0
        %1330 = vmatprep.subr.mxu0 0.0
        %1331 = vmatpush1.msra.mxu0 0.0
        %1332 = vmatprep.subr.mxu0 0.0
        %1333 = vmatpush1.msra.mxu0 0.0
        %1334 = vmatprep.subr.mxu0 0.0
        %1335 = vmatpush1.msra.mxu0 0.0
        %1336 = vmatprep.subr.mxu0 0.0
        %1337 = vmatpush1.msra.mxu0 0.0
        %1338 = vmatprep.subr.mxu0 0.0
        %1339 = vmatpush1.msra.mxu0 0.0
        %1340 = vmatprep.subr.mxu0 0.0
        %1341 = vmatpush1.msra.mxu0 0.0
        %1342 = vmatprep.subr.mxu0 0.0
        %1343 = vmatpush1.msra.mxu0 0.0
        %1344 = vmatprep.subr.mxu0 0.0
        %1345 = vmatpush1.msra.mxu0 0.0
        %1346 = vmatprep.subr.mxu0 0.0
        %1347 = vmatpush1.msra.mxu0 0.0
        %1348 = vmatprep.subr.mxu0 0.0
        %1349 = vmatpush1.msra.mxu0 0.0
        %1350 = vmatprep.subr.mxu0 0.0
        %1351 = vmatpush1.msra.mxu0 0.0
        %1352 = vmatprep.subr.mxu0 0.0
        %1353 = vmatpush1.msra.mxu0 0.0
        %1354 = vmatprep.subr.mxu0 0.0
        %1355 = vmatpush1.msra.mxu0 0.0
        %1356 = vmatprep.subr.mxu0 0.0
        %1357 = vmatpush1.msra.mxu0 0.0
        %1358 = vmatprep.subr.mxu0 0.0
        %1359 = vmatpush1.msra.mxu0 0.0
        %1360 = vmatprep.subr.mxu0 0.0
        %1361 = vmatpush1.msra.mxu0 0.0
        %1362 = vmatprep.subr.mxu0 0.0
        %1363 = vmatpush1.msra.mxu0 0.0
        %1364 = vmatprep.subr.mxu0 0.0
        %1365 = vmatpush1.msra.mxu0 0.0
        %1366 = vmatprep.subr.mxu0 0.0
        %1367 = vmatpush1.msra.mxu0 0.0
        %1368 = vmatprep.subr.mxu0 0.0
        %1369 = vmatpush1.msra.mxu0 0.0
        %1370 = vmatprep.subr.mxu0 0.0
        %1371 = vmatpush1.msra.mxu0 0.0
        %1372 = vmatprep.subr.mxu0 0.0
        %1373 = vmatpush1.msra.mxu0 0.0
        %1374 = vmatprep.subr.mxu0 0.0
        %1375 = vmatpush1.msra.mxu0 0.0
        %1376 = vmatprep.mubr.f32.mxu0 0.0
        %1377 = vmatmul.mubr.f32.gmra.mrb[0].mxu0 %v1301
        %v1378 = vpop.f32.mrb[0].mxu0
        %v1379 = vadd.f32 0.0, %v1378
        %v1380 = vpop.f32.mrb[0].mxu0
        %1381 = vmatprep.mubr.f32.mxu0 0.0
        %1382 = vmatmul.mubr.f32.gmra.mrb[0].mxu0 %v1304
        %v1383 = vpop.f32.mrb[0].mxu0
        %v1384 = vadd.f32 0.0, %v1383
        %v1385 = vpop.f32.mrb[0].mxu0
        %1386 = vmatprep.mubr.f32.mxu0 0.0
        %1387 = vmatmul.mubr.f32.gmra.mrb[0].mxu0 %v1307
        %v1388 = vpop.f32.mrb[0].mxu0
        %v1389 = vadd.f32 0.0, %v1388
        %v1390 = vpop.f32.mrb[0].mxu0
        %1391 = vdwg.mxu0
        %v1392 = vadd.f32 %v1282, %v1379
        %v1393 = vadd.f32 %v1283, %v1384
        %v1394 = vadd.f32 %v1284, %v1389
        %v1395 = vld [vmem:[#allocation2] sm:$0xff]
        %v1397 = vcombine.high %v1395, %v1395
        %1398 = vrot.lane.b32.xlu0 %v1395, 93
        %v1399 = vpop.permute.xlu0 %1398
        %1400 = vrot.lane.b32.xlu0 %v1397, 93
        %v1401 = vpop.permute.xlu0 %1400
        %vm1402 = vcmask 760832
        %v1403 = vsel %vm1402, %v1399, %v1401
        %v1405 = vsel %vm521, %v1403, 0.0
        %s1406 = scalar_lea.vmem %s1, 264
        %v1407 = vld [vmem:[%s1406] sm:$0xff]
        %v1408 = vld [vmem:[%s1406 + $0x8] sm:$0xff]
        %v1409 = vld [vmem:[%s1406 + $0x10] sm:$0xff]
        %v1411 = vsel %vm222, %v1407, 0
        %v1414 = vsel %vm222, %v1408, 0
        %v1417 = vsel %vm222, %v1409, 0
        %v1420 = vsel %vm232, %v1405, 0
        %1422 = vmatprep.subr.mxu0 0.0
        %1423 = vmatpush1.msra.mxu0 %v1420
        %1424 = vmatprep.subr.mxu0 0.0
        %1425 = vmatpush1.msra.mxu0 0.0
        %1426 = vmatprep.subr.mxu0 0.0
        %1427 = vmatpush1.msra.mxu0 0.0
        %1428 = vmatprep.subr.mxu0 0.0
        %1429 = vmatpush1.msra.mxu0 0.0
        %1430 = vmatprep.subr.mxu0 0.0
        %1431 = vmatpush1.msra.mxu0 0.0
        %1432 = vmatprep.subr.mxu0 0.0
        %1433 = vmatpush1.msra.mxu0 0.0
        %1434 = vmatprep.subr.mxu0 0.0
        %1435 = vmatpush1.msra.mxu0 0.0
        %1436 = vmatprep.subr.mxu0 0.0
        %1437 = vmatpush1.msra.mxu0 0.0
        %1438 = vmatprep.subr.mxu0 0.0
        %1439 = vmatpush1.msra.mxu0 0.0
        %1440 = vmatprep.subr.mxu0 0.0
        %1441 = vmatpush1.msra.mxu0 0.0
        %1442 = vmatprep.subr.mxu0 0.0
        %1443 = vmatpush1.msra.mxu0 0.0
        %1444 = vmatprep.subr.mxu0 0.0
        %1445 = vmatpush1.msra.mxu0 0.0
        %1446 = vmatprep.subr.mxu0 0.0
        %1447 = vmatpush1.msra.mxu0 0.0
        %1448 = vmatprep.subr.mxu0 0.0
        %1449 = vmatpush1.msra.mxu0 0.0
        %1450 = vmatprep.subr.mxu0 0.0
        %1451 = vmatpush1.msra.mxu0 0.0
        %1452 = vmatprep.subr.mxu0 0.0
        %1453 = vmatpush1.msra.mxu0 0.0
        %1454 = vmatprep.subr.mxu0 0.0
        %1455 = vmatpush1.msra.mxu0 0.0
        %1456 = vmatprep.subr.mxu0 0.0
        %1457 = vmatpush1.msra.mxu0 0.0
        %1458 = vmatprep.subr.mxu0 0.0
        %1459 = vmatpush1.msra.mxu0 0.0
        %1460 = vmatprep.subr.mxu0 0.0
        %1461 = vmatpush1.msra.mxu0 0.0
        %1462 = vmatprep.subr.mxu0 0.0
        %1463 = vmatpush1.msra.mxu0 0.0
        %1464 = vmatprep.subr.mxu0 0.0
        %1465 = vmatpush1.msra.mxu0 0.0
        %1466 = vmatprep.subr.mxu0 0.0
        %1467 = vmatpush1.msra.mxu0 0.0
        %1468 = vmatprep.subr.mxu0 0.0
        %1469 = vmatpush1.msra.mxu0 0.0
        %1470 = vmatprep.subr.mxu0 0.0
        %1471 = vmatpush1.msra.mxu0 0.0
        %1472 = vmatprep.subr.mxu0 0.0
        %1473 = vmatpush1.msra.mxu0 0.0
        %1474 = vmatprep.subr.mxu0 0.0
        %1475 = vmatpush1.msra.mxu0 0.0
        %1476 = vmatprep.subr.mxu0 0.0
        %1477 = vmatpush1.msra.mxu0 0.0
        %1478 = vmatprep.subr.mxu0 0.0
        %1479 = vmatpush1.msra.mxu0 0.0
        %1480 = vmatprep.subr.mxu0 0.0
        %1481 = vmatpush1.msra.mxu0 0.0
        %1482 = vmatprep.subr.mxu0 0.0
        %1483 = vmatpush1.msra.mxu0 0.0
        %1484 = vmatprep.subr.mxu0 0.0
        %1485 = vmatpush1.msra.mxu0 0.0
        %1486 = vmatprep.mubr.f32.mxu0 0.0
        %1487 = vmatmul.mubr.f32.gmra.mrb[0].mxu0 %v1411
        %v1488 = vpop.f32.mrb[0].mxu0
        %v1489 = vadd.f32 0.0, %v1488
        %v1490 = vpop.f32.mrb[0].mxu0
        %1491 = vmatprep.mubr.f32.mxu0 0.0
        %1492 = vmatmul.mubr.f32.gmra.mrb[0].mxu0 %v1414
        %v1493 = vpop.f32.mrb[0].mxu0
        %v1494 = vadd.f32 0.0, %v1493
        %v1495 = vpop.f32.mrb[0].mxu0
        %1496 = vmatprep.mubr.f32.mxu0 0.0
        %1497 = vmatmul.mubr.f32.gmra.mrb[0].mxu0 %v1417
        %v1498 = vpop.f32.mrb[0].mxu0
        %v1499 = vadd.f32 0.0, %v1498
        %v1500 = vpop.f32.mrb[0].mxu0
        %1501 = vdwg.mxu0
        %v1502 = vadd.f32 %v1392, %v1489
        %v1503 = vadd.f32 %v1393, %v1494
        %v1504 = vadd.f32 %v1394, %v1499
        %v1505 = vld [vmem:[#allocation2] sm:$0xff]
        %v1507 = vcombine.high %v1505, %v1505
        %1508 = vrot.lane.b32.xlu0 %v1505, 80
        %v1509 = vpop.permute.xlu0 %1508
        %1510 = vrot.lane.b32.xlu0 %v1507, 80
        %v1511 = vpop.permute.xlu0 %1510
        %vm1512 = vcmask 654336
        %v1513 = vsel %vm1512, %v1509, %v1511
        %v1515 = vsel %vm204, %v1513, 0.0
        %s1516 = scalar_lea.vmem %s1, 288
        %v1517 = vld [vmem:[%s1516] sm:$0xff]
        %v1518 = vld [vmem:[%s1516 + $0x8] sm:$0xff]
        %v1519 = vld [vmem:[%s1516 + $0x10] sm:$0xff]
        %v1521 = vsel %vm222, %v1517, 0
        %v1524 = vsel %vm222, %v1518, 0
        %v1527 = vsel %vm222, %v1519, 0
        %v1530 = vsel %vm232, %v1515, 0
        %1532 = vmatprep.subr.mxu0 0.0
        %1533 = vmatpush1.msra.mxu0 %v1530
        %1534 = vmatprep.subr.mxu0 0.0
        %1535 = vmatpush1.msra.mxu0 0.0
        %1536 = vmatprep.subr.mxu0 0.0
        %1537 = vmatpush1.msra.mxu0 0.0
        %1538 = vmatprep.subr.mxu0 0.0
        %1539 = vmatpush1.msra.mxu0 0.0
        %1540 = vmatprep.subr.mxu0 0.0
        %1541 = vmatpush1.msra.mxu0 0.0
        %1542 = vmatprep.subr.mxu0 0.0
        %1543 = vmatpush1.msra.mxu0 0.0
        %1544 = vmatprep.subr.mxu0 0.0
        %1545 = vmatpush1.msra.mxu0 0.0
        %1546 = vmatprep.subr.mxu0 0.0
        %1547 = vmatpush1.msra.mxu0 0.0
        %1548 = vmatprep.subr.mxu0 0.0
        %1549 = vmatpush1.msra.mxu0 0.0
        %1550 = vmatprep.subr.mxu0 0.0
        %1551 = vmatpush1.msra.mxu0 0.0
        %1552 = vmatprep.subr.mxu0 0.0
        %1553 = vmatpush1.msra.mxu0 0.0
        %1554 = vmatprep.subr.mxu0 0.0
        %1555 = vmatpush1.msra.mxu0 0.0
        %1556 = vmatprep.subr.mxu0 0.0
        %1557 = vmatpush1.msra.mxu0 0.0
        %1558 = vmatprep.subr.mxu0 0.0
        %1559 = vmatpush1.msra.mxu0 0.0
        %1560 = vmatprep.subr.mxu0 0.0
        %1561 = vmatpush1.msra.mxu0 0.0
        %1562 = vmatprep.subr.mxu0 0.0
        %1563 = vmatpush1.msra.mxu0 0.0
        %1564 = vmatprep.subr.mxu0 0.0
        %1565 = vmatpush1.msra.mxu0 0.0
        %1566 = vmatprep.subr.mxu0 0.0
        %1567 = vmatpush1.msra.mxu0 0.0
        %1568 = vmatprep.subr.mxu0 0.0
        %1569 = vmatpush1.msra.mxu0 0.0
        %1570 = vmatprep.subr.mxu0 0.0
        %1571 = vmatpush1.msra.mxu0 0.0
        %1572 = vmatprep.subr.mxu0 0.0
        %1573 = vmatpush1.msra.mxu0 0.0
        %1574 = vmatprep.subr.mxu0 0.0
        %1575 = vmatpush1.msra.mxu0 0.0
        %1576 = vmatprep.subr.mxu0 0.0
        %1577 = vmatpush1.msra.mxu0 0.0
        %1578 = vmatprep.subr.mxu0 0.0
        %1579 = vmatpush1.msra.mxu0 0.0
        %1580 = vmatprep.subr.mxu0 0.0
        %1581 = vmatpush1.msra.mxu0 0.0
        %1582 = vmatprep.subr.mxu0 0.0
        %1583 = vmatpush1.msra.mxu0 0.0
        %1584 = vmatprep.subr.mxu0 0.0
        %1585 = vmatpush1.msra.mxu0 0.0
        %1586 = vmatprep.subr.mxu0 0.0
        %1587 = vmatpush1.msra.mxu0 0.0
        %1588 = vmatprep.subr.mxu0 0.0
        %1589 = vmatpush1.msra.mxu0 0.0
        %1590 = vmatprep.subr.mxu0 0.0
        %1591 = vmatpush1.msra.mxu0 0.0
        %1592 = vmatprep.subr.mxu0 0.0
        %1593 = vmatpush1.msra.mxu0 0.0
        %1594 = vmatprep.subr.mxu0 0.0
        %1595 = vmatpush1.msra.mxu0 0.0
        %1596 = vmatprep.mubr.f32.mxu0 0.0
        %1597 = vmatmul.mubr.f32.gmra.mrb[0].mxu0 %v1521
        %v1598 = vpop.f32.mrb[0].mxu0
        %v1599 = vadd.f32 0.0, %v1598
        %v1600 = vpop.f32.mrb[0].mxu0
        %1601 = vmatprep.mubr.f32.mxu0 0.0
        %1602 = vmatmul.mubr.f32.gmra.mrb[0].mxu0 %v1524
        %v1603 = vpop.f32.mrb[0].mxu0
        %v1604 = vadd.f32 0.0, %v1603
        %v1605 = vpop.f32.mrb[0].mxu0
        %1606 = vmatprep.mubr.f32.mxu0 0.0
        %1607 = vmatmul.mubr.f32.gmra.mrb[0].mxu0 %v1527
        %v1608 = vpop.f32.mrb[0].mxu0
        %v1609 = vadd.f32 0.0, %v1608
        %v1610 = vpop.f32.mrb[0].mxu0
        %1611 = vdwg.mxu0
        %v1612 = vadd.f32 %v1502, %v1599
        %v1613 = vadd.f32 %v1503, %v1604
        %v1614 = vadd.f32 %v1504, %v1609
        %v1615 = vld [vmem:[#allocation2] sm:$0xff]
        %s1616 = scalar_lea.vmem %s1, 312
        %v1617 = vld [vmem:[%s1616] sm:$0xff]
        %v1618 = vld [vmem:[%s1616 + $0x8] sm:$0xff]
        %v1619 = vld [vmem:[%s1616 + $0x10] sm:$0xff]
        %v1621 = vcombine.high %v1615, %v1615
        %1622 = vrot.lane.b32.xlu0 %v1615, 79
        %v1623 = vpop.permute.xlu0 %1622
        %1624 = vrot.lane.b32.xlu0 %v1621, 79
        %v1625 = vpop.permute.xlu0 %1624
        %vm1626 = vcmask 646144
        %v1627 = vsel %vm1626, %v1623, %v1625
        %v1629 = vsel %vm222, %v1617, 0
        %v1632 = vsel %vm222, %v1618, 0
        %v1635 = vsel %vm222, %v1619, 0
        %v1637 = vsel %vm232, %v1627, 0
        %1639 = vmatprep.subr.mxu0 0.0
        %1640 = vmatpush1.msra.mxu0 %v1637
        %1641 = vmatprep.subr.mxu0 0.0
        %1642 = vmatpush1.msra.mxu0 0.0
        %1643 = vmatprep.subr.mxu0 0.0
        %1644 = vmatpush1.msra.mxu0 0.0
        %1645 = vmatprep.subr.mxu0 0.0
        %1646 = vmatpush1.msra.mxu0 0.0
        %1647 = vmatprep.subr.mxu0 0.0
        %1648 = vmatpush1.msra.mxu0 0.0
        %1649 = vmatprep.subr.mxu0 0.0
        %1650 = vmatpush1.msra.mxu0 0.0
        %1651 = vmatprep.subr.mxu0 0.0
        %1652 = vmatpush1.msra.mxu0 0.0
        %1653 = vmatprep.subr.mxu0 0.0
        %1654 = vmatpush1.msra.mxu0 0.0
        %1655 = vmatprep.subr.mxu0 0.0
        %1656 = vmatpush1.msra.mxu0 0.0
        %1657 = vmatprep.subr.mxu0 0.0
        %1658 = vmatpush1.msra.mxu0 0.0
        %1659 = vmatprep.subr.mxu0 0.0
        %1660 = vmatpush1.msra.mxu0 0.0
        %1661 = vmatprep.subr.mxu0 0.0
        %1662 = vmatpush1.msra.mxu0 0.0
        %1663 = vmatprep.subr.mxu0 0.0
        %1664 = vmatpush1.msra.mxu0 0.0
        %1665 = vmatprep.subr.mxu0 0.0
        %1666 = vmatpush1.msra.mxu0 0.0
        %1667 = vmatprep.subr.mxu0 0.0
        %1668 = vmatpush1.msra.mxu0 0.0
        %1669 = vmatprep.subr.mxu0 0.0
        %1670 = vmatpush1.msra.mxu0 0.0
        %1671 = vmatprep.subr.mxu0 0.0
        %1672 = vmatpush1.msra.mxu0 0.0
        %1673 = vmatprep.subr.mxu0 0.0
        %1674 = vmatpush1.msra.mxu0 0.0
        %1675 = vmatprep.subr.mxu0 0.0
        %1676 = vmatpush1.msra.mxu0 0.0
        %1677 = vmatprep.subr.mxu0 0.0
        %1678 = vmatpush1.msra.mxu0 0.0
        %1679 = vmatprep.subr.mxu0 0.0
        %1680 = vmatpush1.msra.mxu0 0.0
        %1681 = vmatprep.subr.mxu0 0.0
        %1682 = vmatpush1.msra.mxu0 0.0
        %1683 = vmatprep.subr.mxu0 0.0
        %1684 = vmatpush1.msra.mxu0 0.0
        %1685 = vmatprep.subr.mxu0 0.0
        %1686 = vmatpush1.msra.mxu0 0.0
        %1687 = vmatprep.subr.mxu0 0.0
        %1688 = vmatpush1.msra.mxu0 0.0
        %1689 = vmatprep.subr.mxu0 0.0
        %1690 = vmatpush1.msra.mxu0 0.0
        %1691 = vmatprep.subr.mxu0 0.0
        %1692 = vmatpush1.msra.mxu0 0.0
        %1693 = vmatprep.subr.mxu0 0.0
        %1694 = vmatpush1.msra.mxu0 0.0
        %1695 = vmatprep.subr.mxu0 0.0
        %1696 = vmatpush1.msra.mxu0 0.0
        %1697 = vmatprep.subr.mxu0 0.0
        %1698 = vmatpush1.msra.mxu0 0.0
        %1699 = vmatprep.subr.mxu0 0.0
        %1700 = vmatpush1.msra.mxu0 0.0
        %1701 = vmatprep.subr.mxu0 0.0
        %1702 = vmatpush1.msra.mxu0 0.0
        %1703 = vmatprep.mubr.f32.mxu0 0.0
        %1704 = vmatmul.mubr.f32.gmra.mrb[0].mxu0 %v1629
        %v1705 = vpop.f32.mrb[0].mxu0
        %v1706 = vadd.f32 0.0, %v1705
        %v1707 = vpop.f32.mrb[0].mxu0
        %1708 = vmatprep.mubr.f32.mxu0 0.0
        %1709 = vmatmul.mubr.f32.gmra.mrb[0].mxu0 %v1632
        %v1710 = vpop.f32.mrb[0].mxu0
        %v1711 = vadd.f32 0.0, %v1710
        %v1712 = vpop.f32.mrb[0].mxu0
        %1713 = vmatprep.mubr.f32.mxu0 0.0
        %1714 = vmatmul.mubr.f32.gmra.mrb[0].mxu0 %v1635
        %v1715 = vpop.f32.mrb[0].mxu0
        %v1716 = vadd.f32 0.0, %v1715
        %v1717 = vpop.f32.mrb[0].mxu0
        %1718 = vdwg.mxu0
        %v1719 = vadd.f32 %v1612, %v1706
        %v1720 = vadd.f32 %v1613, %v1711
        %v1721 = vadd.f32 %v1614, %v1716
        %v1722 = vld [vmem:[#allocation2] sm:$0xff]
        %v1724 = vcombine.high %v1722, %v1722
        %1725 = vrot.lane.b32.xlu0 %v1722, 78
        %v1726 = vpop.permute.xlu0 %1725
        %1727 = vrot.lane.b32.xlu0 %v1724, 78
        %v1728 = vpop.permute.xlu0 %1727
        %vm1729 = vcmask 637952
        %v1730 = vsel %vm1729, %v1726, %v1728
        %v1732 = vsel %vm409, %v1730, 0.0
        %s1733 = scalar_lea.vmem %s1, 336
        %v1734 = vld [vmem:[%s1733] sm:$0xff]
        %v1735 = vld [vmem:[%s1733 + $0x8] sm:$0xff]
        %v1736 = vld [vmem:[%s1733 + $0x10] sm:$0xff]
        %v1738 = vsel %vm222, %v1734, 0
        %v1741 = vsel %vm222, %v1735, 0
        %v1744 = vsel %vm222, %v1736, 0
        %v1747 = vsel %vm232, %v1732, 0
        %1749 = vmatprep.subr.mxu0 0.0
        %1750 = vmatpush1.msra.mxu0 %v1747
        %1751 = vmatprep.subr.mxu0 0.0
        %1752 = vmatpush1.msra.mxu0 0.0
        %1753 = vmatprep.subr.mxu0 0.0
        %1754 = vmatpush1.msra.mxu0 0.0
        %1755 = vmatprep.subr.mxu0 0.0
        %1756 = vmatpush1.msra.mxu0 0.0
        %1757 = vmatprep.subr.mxu0 0.0
        %1758 = vmatpush1.msra.mxu0 0.0
        %1759 = vmatprep.subr.mxu0 0.0
        %1760 = vmatpush1.msra.mxu0 0.0
        %1761 = vmatprep.subr.mxu0 0.0
        %1762 = vmatpush1.msra.mxu0 0.0
        %1763 = vmatprep.subr.mxu0 0.0
        %1764 = vmatpush1.msra.mxu0 0.0
        %1765 = vmatprep.subr.mxu0 0.0
        %1766 = vmatpush1.msra.mxu0 0.0
        %1767 = vmatprep.subr.mxu0 0.0
        %1768 = vmatpush1.msra.mxu0 0.0
        %1769 = vmatprep.subr.mxu0 0.0
        %1770 = vmatpush1.msra.mxu0 0.0
        %1771 = vmatprep.subr.mxu0 0.0
        %1772 = vmatpush1.msra.mxu0 0.0
        %1773 = vmatprep.subr.mxu0 0.0
        %1774 = vmatpush1.msra.mxu0 0.0
        %1775 = vmatprep.subr.mxu0 0.0
        %1776 = vmatpush1.msra.mxu0 0.0
        %1777 = vmatprep.subr.mxu0 0.0
        %1778 = vmatpush1.msra.mxu0 0.0
        %1779 = vmatprep.subr.mxu0 0.0
        %1780 = vmatpush1.msra.mxu0 0.0
        %1781 = vmatprep.subr.mxu0 0.0
        %1782 = vmatpush1.msra.mxu0 0.0
        %1783 = vmatprep.subr.mxu0 0.0
        %1784 = vmatpush1.msra.mxu0 0.0
        %1785 = vmatprep.subr.mxu0 0.0
        %1786 = vmatpush1.msra.mxu0 0.0
        %1787 = vmatprep.subr.mxu0 0.0
        %1788 = vmatpush1.msra.mxu0 0.0
        %1789 = vmatprep.subr.mxu0 0.0
        %1790 = vmatpush1.msra.mxu0 0.0
        %1791 = vmatprep.subr.mxu0 0.0
        %1792 = vmatpush1.msra.mxu0 0.0
        %1793 = vmatprep.subr.mxu0 0.0
        %1794 = vmatpush1.msra.mxu0 0.0
        %1795 = vmatprep.subr.mxu0 0.0
        %1796 = vmatpush1.msra.mxu0 0.0
        %1797 = vmatprep.subr.mxu0 0.0
        %1798 = vmatpush1.msra.mxu0 0.0
        %1799 = vmatprep.subr.mxu0 0.0
        %1800 = vmatpush1.msra.mxu0 0.0
        %1801 = vmatprep.subr.mxu0 0.0
        %1802 = vmatpush1.msra.mxu0 0.0
        %1803 = vmatprep.subr.mxu0 0.0
        %1804 = vmatpush1.msra.mxu0 0.0
        %1805 = vmatprep.subr.mxu0 0.0
        %1806 = vmatpush1.msra.mxu0 0.0
        %1807 = vmatprep.subr.mxu0 0.0
        %1808 = vmatpush1.msra.mxu0 0.0
        %1809 = vmatprep.subr.mxu0 0.0
        %1810 = vmatpush1.msra.mxu0 0.0
        %1811 = vmatprep.subr.mxu0 0.0
        %1812 = vmatpush1.msra.mxu0 0.0
        %1813 = vmatprep.mubr.f32.mxu0 0.0
        %1814 = vmatmul.mubr.f32.gmra.mrb[0].mxu0 %v1738
        %v1815 = vpop.f32.mrb[0].mxu0
        %v1816 = vadd.f32 0.0, %v1815
        %v1817 = vpop.f32.mrb[0].mxu0
        %1818 = vmatprep.mubr.f32.mxu0 0.0
        %1819 = vmatmul.mubr.f32.gmra.mrb[0].mxu0 %v1741
        %v1820 = vpop.f32.mrb[0].mxu0
        %v1821 = vadd.f32 0.0, %v1820
        %v1822 = vpop.f32.mrb[0].mxu0
        %1823 = vmatprep.mubr.f32.mxu0 0.0
        %1824 = vmatmul.mubr.f32.gmra.mrb[0].mxu0 %v1744
        %v1825 = vpop.f32.mrb[0].mxu0
        %v1826 = vadd.f32 0.0, %v1825
        %v1827 = vpop.f32.mrb[0].mxu0
        %1828 = vdwg.mxu0
        %v1829 = vadd.f32 %v1719, %v1816
        %v1830 = vadd.f32 %v1720, %v1821
        %v1831 = vadd.f32 %v1721, %v1826
        %v1832 = vld [vmem:[#allocation2] sm:$0xff]
        %v1834 = vcombine.high %v1832, %v1832
        %1835 = vrot.lane.b32.xlu0 %v1832, 77
        %v1836 = vpop.permute.xlu0 %1835
        %1837 = vrot.lane.b32.xlu0 %v1834, 77
        %v1838 = vpop.permute.xlu0 %1837
        %vm1839 = vcmask 629760
        %v1840 = vsel %vm1839, %v1836, %v1838
        %v1842 = vsel %vm521, %v1840, 0.0
        %s1843 = scalar_lea.vmem %s1, 360
        %v1844 = vld [vmem:[%s1843] sm:$0xff]
        %v1845 = vld [vmem:[%s1843 + $0x8] sm:$0xff]
        %v1846 = vld [vmem:[%s1843 + $0x10] sm:$0xff]
        %v1848 = vsel %vm222, %v1844, 0
        %v1851 = vsel %vm222, %v1845, 0
        %v1854 = vsel %vm222, %v1846, 0
        %v1857 = vsel %vm232, %v1842, 0
        %1859 = vmatprep.subr.mxu0 0.0
        %1860 = vmatpush1.msra.mxu0 %v1857
        %1861 = vmatprep.subr.mxu0 0.0
        %1862 = vmatpush1.msra.mxu0 0.0
        %1863 = vmatprep.subr.mxu0 0.0
        %1864 = vmatpush1.msra.mxu0 0.0
        %1865 = vmatprep.subr.mxu0 0.0
        %1866 = vmatpush1.msra.mxu0 0.0
        %1867 = vmatprep.subr.mxu0 0.0
        %1868 = vmatpush1.msra.mxu0 0.0
        %1869 = vmatprep.subr.mxu0 0.0
        %1870 = vmatpush1.msra.mxu0 0.0
        %1871 = vmatprep.subr.mxu0 0.0
        %1872 = vmatpush1.msra.mxu0 0.0
        %1873 = vmatprep.subr.mxu0 0.0
        %1874 = vmatpush1.msra.mxu0 0.0
        %1875 = vmatprep.subr.mxu0 0.0
        %1876 = vmatpush1.msra.mxu0 0.0
        %1877 = vmatprep.subr.mxu0 0.0
        %1878 = vmatpush1.msra.mxu0 0.0
        %1879 = vmatprep.subr.mxu0 0.0
        %1880 = vmatpush1.msra.mxu0 0.0
        %1881 = vmatprep.subr.mxu0 0.0
        %1882 = vmatpush1.msra.mxu0 0.0
        %1883 = vmatprep.subr.mxu0 0.0
        %1884 = vmatpush1.msra.mxu0 0.0
        %1885 = vmatprep.subr.mxu0 0.0
        %1886 = vmatpush1.msra.mxu0 0.0
        %1887 = vmatprep.subr.mxu0 0.0
        %1888 = vmatpush1.msra.mxu0 0.0
        %1889 = vmatprep.subr.mxu0 0.0
        %1890 = vmatpush1.msra.mxu0 0.0
        %1891 = vmatprep.subr.mxu0 0.0
        %1892 = vmatpush1.msra.mxu0 0.0
        %1893 = vmatprep.subr.mxu0 0.0
        %1894 = vmatpush1.msra.mxu0 0.0
        %1895 = vmatprep.subr.mxu0 0.0
        %1896 = vmatpush1.msra.mxu0 0.0
        %1897 = vmatprep.subr.mxu0 0.0
        %1898 = vmatpush1.msra.mxu0 0.0
        %1899 = vmatprep.subr.mxu0 0.0
        %1900 = vmatpush1.msra.mxu0 0.0
        %1901 = vmatprep.subr.mxu0 0.0
        %1902 = vmatpush1.msra.mxu0 0.0
        %1903 = vmatprep.subr.mxu0 0.0
        %1904 = vmatpush1.msra.mxu0 0.0
        %1905 = vmatprep.subr.mxu0 0.0
        %1906 = vmatpush1.msra.mxu0 0.0
        %1907 = vmatprep.subr.mxu0 0.0
        %1908 = vmatpush1.msra.mxu0 0.0
        %1909 = vmatprep.subr.mxu0 0.0
        %1910 = vmatpush1.msra.mxu0 0.0
        %1911 = vmatprep.subr.mxu0 0.0
        %1912 = vmatpush1.msra.mxu0 0.0
        %1913 = vmatprep.subr.mxu0 0.0
        %1914 = vmatpush1.msra.mxu0 0.0
        %1915 = vmatprep.subr.mxu0 0.0
        %1916 = vmatpush1.msra.mxu0 0.0
        %1917 = vmatprep.subr.mxu0 0.0
        %1918 = vmatpush1.msra.mxu0 0.0
        %1919 = vmatprep.subr.mxu0 0.0
        %1920 = vmatpush1.msra.mxu0 0.0
        %1921 = vmatprep.subr.mxu0 0.0
        %1922 = vmatpush1.msra.mxu0 0.0
        %1923 = vmatprep.mubr.f32.mxu0 0.0
        %1924 = vmatmul.mubr.f32.gmra.mrb[0].mxu0 %v1848
        %v1925 = vpop.f32.mrb[0].mxu0
        %v1926 = vadd.f32 0.0, %v1925
        %v1927 = vpop.f32.mrb[0].mxu0
        %1928 = vmatprep.mubr.f32.mxu0 0.0
        %1929 = vmatmul.mubr.f32.gmra.mrb[0].mxu0 %v1851
        %v1930 = vpop.f32.mrb[0].mxu0
        %v1931 = vadd.f32 0.0, %v1930
        %v1932 = vpop.f32.mrb[0].mxu0
        %1933 = vmatprep.mubr.f32.mxu0 0.0
        %1934 = vmatmul.mubr.f32.gmra.mrb[0].mxu0 %v1854
        %v1935 = vpop.f32.mrb[0].mxu0
        %v1936 = vadd.f32 0.0, %v1935
        %v1937 = vpop.f32.mrb[0].mxu0
        %1938 = vdwg.mxu0
        %v1939 = vadd.f32 %v1829, %v1926
        %v1940 = vadd.f32 %v1830, %v1931
        %v1941 = vadd.f32 %v1831, %v1936
        %1943 = vset.pattern.permute.xlu0 0
        %1944 = vperm.xlu0 %1943, %v188
        %v1945 = vpop.permute.xlu0 %1944
        %1948 = vset.pattern.permute.xlu0 0
        %1949 = vperm.xlu0 %1948, %v189
        %v1950 = vpop.permute.xlu0 %1949
        %1953 = vset.pattern.permute.xlu0 0
        %1954 = vperm.xlu0 %1953, %v190
        %v1955 = vpop.permute.xlu0 %1954
        %v1957 = vadd.f32 %v1939, %v1945
        %v1958 = vadd.f32 %v1940, %v1950
        %v1959 = vadd.f32 %v1941, %v1955
        %1960 = vst [vmem:[%s161] sm:$0xff] %v1957
        %1961 = vst [vmem:[%s161 + $0x8] sm:$0xff] %v1958
        %1962 = vst [vmem:[%s161 + $0x10] sm:$0xff] %v1959
        %s1963 = sand.u32 %s93, 1
        %s1964 = scalar_lea.sflag [#allocation4], %s1963
        %s1965 = sand.u32 %s93, 1
        %s1966 = smul.addr %s1965, 24
        %s1967 = scalar_lea.vmem [#allocation3], %s1966
        // Predicated region
        $region33: #{tpu_custom_call.1} parent=31 // pred_check
          %p1968 = pneg %p103
        $region34: #{tpu_custom_call.1} parent=31 // pred_check_branch
          %1970 = sbr.rel (%p1968) target = $region36
        $region35: #{tpu_custom_call.1} parent=31 // pred_region
          %s1972 = ssub.s32 384, 384
          %1973 = vsyncadd %s1964, %s1972
          %s1974 = smul.addr %s17, 3
          %s1975 = smul.addr %s1974, 128
          %s1976 = scalar_lea.hbm %s3, %s1975
          %s1977 = sshll.u32 %s1967, 4
          %s1978 = int_to_ptr.vmem [resolvable:$true] %s1977
          %1983 = dma.vmem_to_hbm [thread:$0]  %s1978, 384, %s1976, %s1964, 128, 128, 8
        $region36: #{tpu_custom_call.1} parent=31 // pred_fallthru
          _
      $region32: #{tpu_custom_call.1} parent=5 // pred_fallthru
        _
      %p1984 = scmp.le.s32.totalorder 2, %s12
      // Predicated region
      $region37: #{tpu_custom_call.1} parent=5 // pred_check
        %p1985 = pneg %p1984
      $region38: #{tpu_custom_call.1} parent=5 // pred_check_branch
        %1987 = sbr.rel (%p1985) target = $region40
      $region39: #{tpu_custom_call.1} parent=5 // pred_region
        %s1988 = ssub.s32 %s12, 2
        // Predicated region
        $region41: #{tpu_custom_call.1} parent=39 // pred_check
          %p1989 = pneg %p109
        $region42: #{tpu_custom_call.1} parent=39 // pred_check_branch
          %1991 = sbr.rel (%p1989) target = $region44
        $region43: #{tpu_custom_call.1} parent=39 // pred_region
          %s1992 = sand.u32 %s94, 1
          %s1993 = scalar_lea.sflag [#allocation4], %s1992
          %s1994 = sand.u32 %s94, 1
          %s1995 = smul.addr %s1994, 24
          %s1996 = scalar_lea.vmem [#allocation3], %s1995
          %1997 = dma.done %s1993, 384
        $region44: #{tpu_custom_call.1} parent=39 // pred_fallthru
          _
      $region40: #{tpu_custom_call.1} parent=5 // pred_fallthru
        _
    $region6: #{tpu_custom_call.1} parent=1 // loop_footer
      %s16 = sadd.s32 1, %s12
    $region7: #{tpu_custom_call.1} parent=1 // loop_footer_branch
      %11 = sbr.rel target = $region3
    $region8: #{tpu_custom_call.1} parent=1 // loop_exit
      _
    %1998 = vsyncpa [#allocation4], 1
    %s1999 = scalar_lea.sflag [#allocation4], 1
    %2000 = vsyncpa %s1999, 1

</llo_original>
